<compile_context>
chip_gen: v7x
topology: tpu7x:2x2x1
jax: 0.10.0
libtpu: 0.0.40
codegen_flags: <defaults>
</compile_context>

<pallas_src>
from functools import partial

import jax
import jax.numpy as jnp
from jax import lax
from jax.experimental import pallas as pl
from jax.experimental.pallas import tpu as pltpu


def _lstm_chunk_kernel(x_ref, w_ih_ref, w_hh_ref, b_ref, h0_ref, c0_ref,
                       y_ref, hn_ref, cn_ref, h_vmem, c_vmem,
                       *, matmul_dtype, unroll):
    """One time-chunk of the LSTM recurrence.

    x_ref  : (B, Tc, E)  batch-first input chunk
    w_ih   : (E, 4H), w_hh : (H, 4H)  packed gate order (i, f, o, g)
    b_ref  : (1, 4H)  pre-summed bias (b_ih + b_hh)
    h0/c0  : (B, H)   initial state (consumed on chunk 0 only)
    y_ref  : (B, Tc, H) batch-first output chunk
    hn/cn  : (B, H)   final state (written on the last chunk only)
    h_vmem / c_vmem : (B, H) f32 VMEM scratch carrying state across chunks.
    """
    chunk = pl.program_id(0)
    B, Tc, E = x_ref.shape
    H = h_vmem.shape[-1]

    @pl.when(chunk == 0)
    def _init():
        h_vmem[...] = h0_ref[...].astype(jnp.float32)
        c_vmem[...] = c0_ref[...].astype(jnp.float32)

    # Weights loaded (and, for the bf16 MXU path, cast) once per chunk.
    w_ih = w_ih_ref[...].astype(matmul_dtype)          # (E, 4H)
    w_hh = w_hh_ref[...].astype(matmul_dtype)          # (H, 4H)
    bias = b_ref[...]                                  # (1, 4H), f32

    def step(i, carry):
        h_prev, c_prev = carry                         # (B, H) f32, in vregs

        # --- off the serial h->h path (independent of carry; overlapped) ---
        x_t = x_ref[:, i, :].astype(matmul_dtype)      # (B, E)
        xh = jnp.dot(x_t, w_ih,
                     preferred_element_type=jnp.float32) + bias   # (B, 4H)

        # --- serial critical path: one fused (B,H)x(H,4H) dot + EUP + VPU ---
        gates = xh + jnp.dot(h_prev.astype(matmul_dtype), w_hh,
                             preferred_element_type=jnp.float32)
        # One lane-dense EUP pass over the (B, 4H) vreg covers i, f, o.
        sig = jax.nn.sigmoid(gates)
        i_g = sig[:, 0 * H:1 * H]
        f_g = sig[:, 1 * H:2 * H]
        o_g = sig[:, 2 * H:3 * H]
        g_g = jnp.tanh(gates[:, 3 * H:4 * H])

        c_new = f_g * c_prev + i_g * g_g
        h_new = o_g * jnp.tanh(c_new)

        # --- off the serial path: batch-first store (masked 32/128 lanes) ---
        y_ref[:, i, :] = h_new.astype(y_ref.dtype)
        return h_new, c_new

    h_n, c_n = lax.fori_loop(0, Tc, step,
                             (h_vmem[...], c_vmem[...]),
                             unroll=unroll)

    # Persist the carry for the next chunk.
    h_vmem[...] = h_n
    c_vmem[...] = c_n

    @pl.when(chunk == pl.num_programs(0) - 1)
    def _final():
        hn_ref[...] = h_n.astype(hn_ref.dtype)
        cn_ref[...] = c_n.astype(cn_ref.dtype)


def _choose_time_chunk(T, target):
    """Largest chunk <= target that divides T and satisfies the sublane rule
    (multiple of 8, or the full extent)."""
    if target is None or T <= target:
        return T
    best = None
    c = 8
    while c <= target:
        if T % c == 0:
            best = c
        c += 8
    return best if best is not None else T


def _vmem_limit_bytes(B, Tc, E, H):
    f32 = 4
    x_chunk = B * Tc * E * f32
    y_chunk = B * Tc * H * f32
    weights = (E * 4 * H + H * 4 * H + 4 * H) * f32
    state = 8 * B * H * f32
    need = 2 * (x_chunk + y_chunk) + weights + state   # 2x: double buffering
    # Generous floor for compiler-internal scratch; cap at v7x 64 MiB physical.
    return int(min(max(4 * need, 16 * 1024 * 1024), 64 * 1024 * 1024))


@partial(jax.jit, static_argnames=("time_chunk", "matmul_dtype"))
def lstm_pallas(x_btE, h0, c0, w_ih_packed, w_hh_packed, b_packed,
                *, time_chunk=64, matmul_dtype=jnp.float32):
    """x_btE: (B, T, E) batch_first.  h0, c0: (B, H).
    w_ih_packed: (E, 4H), w_hh_packed: (H, 4H), b_packed: (1, 4H)
    with b = b_ih + b_hh, packed gate order (i, f, o, g)."""
    B, T, E = x_btE.shape
    H = h0.shape[-1]
    G = 4 * H

    Tc = _choose_time_chunk(T, time_chunk)
    nchunks = T // Tc
    unroll = min(Tc, 8)

    kernel = partial(_lstm_chunk_kernel, matmul_dtype=matmul_dtype,
                     unroll=unroll)

    y, hn, cn = pl.pallas_call(
        kernel,
        out_shape=(
            jax.ShapeDtypeStruct((B, T, H), jnp.float32),
            jax.ShapeDtypeStruct((B, H), jnp.float32),
            jax.ShapeDtypeStruct((B, H), jnp.float32),
        ),
        grid_spec=pltpu.PrefetchScalarGridSpec(
            num_scalar_prefetch=0,
            grid=(nchunks,),
            in_specs=[
                pl.BlockSpec((B, Tc, E), lambda c: (0, c, 0)),   # x chunk
                pl.BlockSpec((E, G), lambda c: (0, 0)),          # W_ih
                pl.BlockSpec((H, G), lambda c: (0, 0)),          # W_hh
                pl.BlockSpec((1, G), lambda c: (0, 0)),          # bias
                pl.BlockSpec((B, H), lambda c: (0, 0)),          # h0
                pl.BlockSpec((B, H), lambda c: (0, 0)),          # c0
            ],
            out_specs=(
                pl.BlockSpec((B, Tc, H), lambda c: (0, c, 0)),   # y chunk
                pl.BlockSpec((B, H), lambda c: (0, 0)),          # hn
                pl.BlockSpec((B, H), lambda c: (0, 0)),          # cn
            ),
            scratch_shapes=[
                pltpu.VMEM((B, H), jnp.float32),                 # h carry
                pltpu.VMEM((B, H), jnp.float32),                 # c carry
            ],
        ),
        compiler_params=pltpu.CompilerParams(
            dimension_semantics=("arbitrary",),
            vmem_limit_bytes=_vmem_limit_bytes(B, Tc, E, H),
        ),
    )(x_btE, w_ih_packed, w_hh_packed, b_packed, h0, c0)

    return y, (hn, cn)


class DecoderPallas:
    """JAX/Pallas analogue of the PyTorch Decoder module."""

    # Torch weight layout is row-chunks (i, f, g, o); we pack columns (i, f, o, g).
    _PACK_ORDER = (0, 1, 3, 2)

    def __init__(self, params, key):
        E = params["txt_emb_size"]
        H = E
        k = 1.0 / jnp.sqrt(jnp.float32(H))
        k_ih, k_hh, k_bi, k_bh = jax.random.split(key, 4)
        # PyTorch-convention parameter shapes: (4H, E), (4H, H), (4H,), (4H,)
        self.weight_ih = jax.random.uniform(k_ih, (4 * H, E), jnp.float32, -k, k)
        self.weight_hh = jax.random.uniform(k_hh, (4 * H, H), jnp.float32, -k, k)
        self.bias_ih = jax.random.uniform(k_bi, (4 * H,), jnp.float32, -k, k)
        self.bias_hh = jax.random.uniform(k_bh, (4 * H,), jnp.float32, -k, k)
        self.H = H
        self.params = params

        # Kernel-friendly packing: fused (., 4H) gate dimension, order (i,f,o,g),
        # transposed for x @ W, biases pre-summed, bias kept 2D (1, 4H).
        w_ih_g = self.weight_ih.reshape(4, H, E)      # (gate, H, E)
        w_hh_g = self.weight_hh.reshape(4, H, H)      # (gate, H, H)
        b_g = (self.bias_ih + self.bias_hh).reshape(4, H)
        order = self._PACK_ORDER
        self.w_ih_packed = jnp.concatenate([w_ih_g[j].T for j in order], axis=1)  # (E, 4H)
        self.w_hh_packed = jnp.concatenate([w_hh_g[j].T for j in order], axis=1)  # (H, 4H)
        self.b_packed = jnp.concatenate([b_g[j] for j in order], axis=0).reshape(1, 4 * H)

    def init_hidden(self, encoder_output):
        B = self.params["batch_size"]
        H = self.params["txt_emb_size"]
        h0 = encoder_output.reshape(1, B, H)
        c0 = jnp.zeros((1, B, H), jnp.float32)
        return (h0, c0)

    def forward(self, inputs, hidden, *, matmul_dtype=jnp.float32, time_chunk=64):
        h0, c0 = hidden                               # each (1, B, H)
        y, (hn, cn) = lstm_pallas(inputs, h0[0], c0[0],
                                  self.w_ih_packed, self.w_hh_packed,
                                  self.b_packed,
                                  time_chunk=time_chunk,
                                  matmul_dtype=matmul_dtype)
        return y, (hn[None], cn[None])


def lstm_reference(x, h0, c0, w_ih, w_hh, b_ih, b_hh):
    """Pure-JAX reference matching torch.nn.LSTM (single layer, batch_first)."""
    def step(carry, x_t):
        h, c = carry
        gates = x_t @ w_ih.T + b_ih + h @ w_hh.T + b_hh
        i, f, g, o = jnp.split(gates, 4, axis=-1)
        i = jax.nn.sigmoid(i)
        f = jax.nn.sigmoid(f)
        g = jnp.tanh(g)
        o = jax.nn.sigmoid(o)
        c = f * c + i * g
        h = o * jnp.tanh(c)
        return (h, c), h

    (hn, cn), ys = lax.scan(step, (h0, c0), jnp.transpose(x, (1, 0, 2)))
    return jnp.transpose(ys, (1, 0, 2)), hn, cn


if __name__ == "__main__":
    params = {"txt_emb_size": 32, "batch_size": 2}
    B, T, E = params["batch_size"], 16, params["txt_emb_size"]

    key = jax.random.PRNGKey(0)
    k_w, k_x, k_enc = jax.random.split(key, 3)

    dec = DecoderPallas(params, k_w)

    token_embeddings = jax.random.normal(k_x, (B, T, E), jnp.float32)
    encoder_output = jax.random.normal(k_enc, (B, E), jnp.float32)

    hidden = dec.init_hidden(encoder_output)

    # time_chunk=8 here deliberately gives a 2-step grid so the cross-chunk
    # (h, c) carry in VMEM scratch is exercised; production would use a larger
    # chunk sized against the VMEM budget.
    y, (hn, cn) = dec.forward(token_embeddings, hidden, time_chunk=8)
    jax.block_until_ready((y, hn, cn))

    # Cross-check against a pure-JAX LSTM reference (torch weight convention).
    y_ref, hn_ref, cn_ref = lstm_reference(
        token_embeddings, hidden[0][0], hidden[1][0],
        dec.weight_ih, dec.weight_hh, dec.bias_ih, dec.bias_hh)

    assert y.shape == (B, T, E) and hn.shape == (1, B, E) and cn.shape == (1, B, E)
    assert jnp.allclose(y, y_ref, atol=1e-5, rtol=1e-5)
    assert jnp.allclose(hn[0], hn_ref, atol=1e-5, rtol=1e-5)
    assert jnp.allclose(cn[0], cn_ref, atol=1e-5, rtol=1e-5)

    # bf16 MXU-operand path (perf mode for v5e/v6e/v7x): operands-only cast,
    # f32 accumulation + f32 element-wise, so the error stays small but larger
    # than the strict f32 tolerance.
    y_bf, (hn_bf, cn_bf) = dec.forward(token_embeddings, hidden,
                                       time_chunk=8,
                                       matmul_dtype=jnp.bfloat16)
    jax.block_until_ready((y_bf, hn_bf, cn_bf))
    assert jnp.all(jnp.isfinite(y_bf))
    assert float(jnp.max(jnp.abs(y_bf - y_ref))) < 5e-2
    assert float(jnp.max(jnp.abs(hn_bf[0] - hn_ref))) < 5e-2
    assert float(jnp.max(jnp.abs(cn_bf[0] - cn_ref))) < 1e-1

    print("KERNEL_OK")
</pallas_src>

<mosaic_0001>
module attributes {stable_mosaic.version = 11 : i64} {
  func.func @_lstm_chunk_kernel(%arg0: i32, %arg1: memref<2x8x32xf32, #tpu.memory_space<vmem>>, %arg2: memref<32x128xf32, #tpu.memory_space<vmem>>, %arg3: memref<32x128xf32, #tpu.memory_space<vmem>>, %arg4: memref<1x128xf32, #tpu.memory_space<vmem>>, %arg5: memref<2x32xf32, #tpu.memory_space<vmem>>, %arg6: memref<2x32xf32, #tpu.memory_space<vmem>>, %arg7: memref<2x8x32xf32, #tpu.memory_space<vmem>>, %arg8: memref<2x32xf32, #tpu.memory_space<vmem>>, %arg9: memref<2x32xf32, #tpu.memory_space<vmem>>, %arg10: memref<2x32xf32, #tpu.memory_space<vmem>>, %arg11: memref<2x32xf32, #tpu.memory_space<vmem>>) attributes {dimension_semantics = [#tpu.dimension_semantics<arbitrary>], iteration_bounds = array<i64: 2>, scalar_prefetch = 0 : i64, scratch_operands = 2 : i64, tpu.core_type = #tpu.core_type<tc>, window_params = [{transform_indices = @transform_0, window_bounds = array<i64: 2, 8, 32>}, {pipeline_mode = #tpu.pipeline_mode<synchronous>, transform_indices = @transform_1, window_bounds = array<i64: 32, 128>}, {pipeline_mode = #tpu.pipeline_mode<synchronous>, transform_indices = @transform_2, window_bounds = array<i64: 32, 128>}, {pipeline_mode = #tpu.pipeline_mode<synchronous>, transform_indices = @transform_3, window_bounds = array<i64: 1, 128>}, {pipeline_mode = #tpu.pipeline_mode<synchronous>, transform_indices = @transform_4, window_bounds = array<i64: 2, 32>}, {pipeline_mode = #tpu.pipeline_mode<synchronous>, transform_indices = @transform_5, window_bounds = array<i64: 2, 32>}, {transform_indices = @transform_6, window_bounds = array<i64: 2, 8, 32>}, {pipeline_mode = #tpu.pipeline_mode<synchronous>, transform_indices = @transform_7, window_bounds = array<i64: 2, 32>}, {pipeline_mode = #tpu.pipeline_mode<synchronous>, transform_indices = @transform_8, window_bounds = array<i64: 2, 32>}]} {
    %c0_i32 = arith.constant 0 : i32
    %0 = arith.cmpi eq, %arg0, %c0_i32 : i32
    %1 = arith.extui %0 : i1 to i32
    %c0_i32_0 = arith.constant 0 : i32
    %2 = arith.cmpi ne, %1, %c0_i32_0 : i32
    scf.if %2 {
      %c0_72 = arith.constant 0 : index
      %c0_73 = arith.constant 0 : index
      %229 = vector.load %arg5[%c0_72, %c0_73] : memref<2x32xf32, #tpu.memory_space<vmem>>, vector<2x32xf32>
      %c0_74 = arith.constant 0 : index
      %c0_75 = arith.constant 0 : index
      %230 = vector.load %arg10[%c0_74, %c0_75] : memref<2x32xf32, #tpu.memory_space<vmem>>, vector<2x32xf32>
      tpu.vector_store %arg10[%c0_74, %c0_75], %229 {strides = array<i32>} : memref<2x32xf32, #tpu.memory_space<vmem>>, vector<2x32xf32>,
      %c0_76 = arith.constant 0 : index
      %c0_77 = arith.constant 0 : index
      %231 = vector.load %arg6[%c0_76, %c0_77] : memref<2x32xf32, #tpu.memory_space<vmem>>, vector<2x32xf32>
      %c0_78 = arith.constant 0 : index
      %c0_79 = arith.constant 0 : index
      %232 = vector.load %arg11[%c0_78, %c0_79] : memref<2x32xf32, #tpu.memory_space<vmem>>, vector<2x32xf32>
      tpu.vector_store %arg11[%c0_78, %c0_79], %231 {strides = array<i32>} : memref<2x32xf32, #tpu.memory_space<vmem>>, vector<2x32xf32>,
    } else {
    }
    %c0 = arith.constant 0 : index
    %c0_1 = arith.constant 0 : index
    %3 = vector.load %arg2[%c0, %c0_1] : memref<32x128xf32, #tpu.memory_space<vmem>>, vector<32x128xf32>
    %c0_2 = arith.constant 0 : index
    %c0_3 = arith.constant 0 : index
    %4 = vector.load %arg3[%c0_2, %c0_3] : memref<32x128xf32, #tpu.memory_space<vmem>>, vector<32x128xf32>
    %c0_4 = arith.constant 0 : index
    %c0_5 = arith.constant 0 : index
    %5 = vector.load %arg4[%c0_4, %c0_5] : memref<1x128xf32, #tpu.memory_space<vmem>>, vector<1x128xf32>
    %c0_6 = arith.constant 0 : index
    %c0_7 = arith.constant 0 : index
    %6 = vector.load %arg10[%c0_6, %c0_7] : memref<2x32xf32, #tpu.memory_space<vmem>>, vector<2x32xf32>
    %c0_8 = arith.constant 0 : index
    %c0_9 = arith.constant 0 : index
    %7 = vector.load %arg11[%c0_8, %c0_9] : memref<2x32xf32, #tpu.memory_space<vmem>>, vector<2x32xf32>
    %c0_i32_10 = arith.constant 0 : i32
    %c0_11 = arith.constant 0 : index
    %8 = arith.index_cast %c0_i32_10 : i32 to index
    %c0_12 = arith.constant 0 : index
    %9 = vector.load %arg1[%c0_11, %8, %c0_12] : memref<2x8x32xf32, #tpu.memory_space<vmem>>, vector<2x1x32xf32>
    %10 = vector.shape_cast %9 : vector<2x1x32xf32> to vector<2x32xf32>
    %cst = arith.constant dense<0.000000e+00> : vector<2x128xf32>
    %11 = tpu.matmul %10, %3, %cst {dimension_numbers = #tpu.dot_dimension_numbers<[1], [0], [0], [1], [0, 0, 1, 1], [], []>} : vector<2x32xf32>, vector<32x128xf32>, vector<2x128xf32> -> vector<2x128xf32>
    %12 = vector.broadcast %5 : vector<1x128xf32> to vector<2x128xf32>
    %13 = arith.addf %11, %12 : vector<2x128xf32>
    %cst_13 = arith.constant dense<0.000000e+00> : vector<2x128xf32>
    %14 = tpu.matmul %6, %4, %cst_13 {dimension_numbers = #tpu.dot_dimension_numbers<[1], [0], [0], [1], [0, 0, 1, 1], [], []>} : vector<2x32xf32>, vector<32x128xf32>, vector<2x128xf32> -> vector<2x128xf32>
    %15 = arith.addf %13, %14 : vector<2x128xf32>
    %16 = arith.negf %15 : vector<2x128xf32>
    %17 = math.exp %16 : vector<2x128xf32>
    %cst_14 = arith.constant 1.000000e+00 : f32
    %18 = vector.broadcast %cst_14 : f32 to vector<2x128xf32>
    %19 = arith.addf %18, %17 : vector<2x128xf32>
    %20 = arith.divf %18, %19 : vector<2x128xf32>
    %21 = vector.extract_strided_slice %20 {offsets = [0, 0], sizes = [2, 32], strides = [1, 1]} : vector<2x128xf32> to vector<2x32xf32>
    %22 = vector.extract_strided_slice %20 {offsets = [0, 32], sizes = [2, 32], strides = [1, 1]} : vector<2x128xf32> to vector<2x32xf32>
    %23 = vector.extract_strided_slice %20 {offsets = [0, 64], sizes = [2, 32], strides = [1, 1]} : vector<2x128xf32> to vector<2x32xf32>
    %24 = vector.extract_strided_slice %15 {offsets = [0, 96], sizes = [2, 32], strides = [1, 1]} : vector<2x128xf32> to vector<2x32xf32>
    %25 = math.tanh %24 : vector<2x32xf32>
    %26 = arith.mulf %22, %7 : vector<2x32xf32>
    %27 = arith.mulf %21, %25 : vector<2x32xf32>
    %28 = arith.addf %26, %27 : vector<2x32xf32>
    %29 = math.tanh %28 : vector<2x32xf32>
    %30 = arith.mulf %23, %29 : vector<2x32xf32>
    %c0_15 = arith.constant 0 : index
    %31 = arith.index_cast %c0_i32_10 : i32 to index
    %c0_16 = arith.constant 0 : index
    %32 = vector.load %arg7[%c0_15, %31, %c0_16] : memref<2x8x32xf32, #tpu.memory_space<vmem>>, vector<2x1x32xf32>
    %33 = vector.shape_cast %32 : vector<2x1x32xf32> to vector<2x32xf32>
    %34 = vector.shape_cast %30 : vector<2x32xf32> to vector<2x1x32xf32>
    tpu.vector_store %arg7[%c0_15, %31, %c0_16], %34 {strides = array<i32>} : memref<2x8x32xf32, #tpu.memory_space<vmem>>, vector<2x1x32xf32>,
    %c1_i32 = arith.constant 1 : i32
    %c0_17 = arith.constant 0 : index
    %35 = arith.index_cast %c1_i32 : i32 to index
    %c0_18 = arith.constant 0 : index
    %36 = vector.load %arg1[%c0_17, %35, %c0_18] : memref<2x8x32xf32, #tpu.memory_space<vmem>>, vector<2x1x32xf32>
    %37 = vector.shape_cast %36 : vector<2x1x32xf32> to vector<2x32xf32>
    %cst_19 = arith.constant dense<0.000000e+00> : vector<2x128xf32>
    %38 = tpu.matmul %37, %3, %cst_19 {dimension_numbers = #tpu.dot_dimension_numbers<[1], [0], [0], [1], [0, 0, 1, 1], [], []>} : vector<2x32xf32>, vector<32x128xf32>, vector<2x128xf32> -> vector<2x128xf32>
    %39 = vector.broadcast %5 : vector<1x128xf32> to vector<2x128xf32>
    %40 = arith.addf %38, %39 : vector<2x128xf32>
    %cst_20 = arith.constant dense<0.000000e+00> : vector<2x128xf32>
    %41 = tpu.matmul %30, %4, %cst_20 {dimension_numbers = #tpu.dot_dimension_numbers<[1], [0], [0], [1], [0, 0, 1, 1], [], []>} : vector<2x32xf32>, vector<32x128xf32>, vector<2x128xf32> -> vector<2x128xf32>
    %42 = arith.addf %40, %41 : vector<2x128xf32>
    %43 = arith.negf %42 : vector<2x128xf32>
    %44 = math.exp %43 : vector<2x128xf32>
    %cst_21 = arith.constant 1.000000e+00 : f32
    %45 = vector.broadcast %cst_21 : f32 to vector<2x128xf32>
    %46 = arith.addf %45, %44 : vector<2x128xf32>
    %47 = arith.divf %45, %46 : vector<2x128xf32>
    %48 = vector.extract_strided_slice %47 {offsets = [0, 0], sizes = [2, 32], strides = [1, 1]} : vector<2x128xf32> to vector<2x32xf32>
    %49 = vector.extract_strided_slice %47 {offsets = [0, 32], sizes = [2, 32], strides = [1, 1]} : vector<2x128xf32> to vector<2x32xf32>
    %50 = vector.extract_strided_slice %47 {offsets = [0, 64], sizes = [2, 32], strides = [1, 1]} : vector<2x128xf32> to vector<2x32xf32>
    %51 = vector.extract_strided_slice %42 {offsets = [0, 96], sizes = [2, 32], strides = [1, 1]} : vector<2x128xf32> to vector<2x32xf32>
    %52 = math.tanh %51 : vector<2x32xf32>
    %53 = arith.mulf %49, %28 : vector<2x32xf32>
    %54 = arith.mulf %48, %52 : vector<2x32xf32>
    %55 = arith.addf %53, %54 : vector<2x32xf32>
    %56 = math.tanh %55 : vector<2x32xf32>
    %57 = arith.mulf %50, %56 : vector<2x32xf32>
    %c0_22 = arith.constant 0 : index
    %58 = arith.index_cast %c1_i32 : i32 to index
    %c0_23 = arith.constant 0 : index
    %59 = vector.load %arg7[%c0_22, %58, %c0_23] : memref<2x8x32xf32, #tpu.memory_space<vmem>>, vector<2x1x32xf32>
    %60 = vector.shape_cast %59 : vector<2x1x32xf32> to vector<2x32xf32>
    %61 = vector.shape_cast %57 : vector<2x32xf32> to vector<2x1x32xf32>
    tpu.vector_store %arg7[%c0_22, %58, %c0_23], %61 {strides = array<i32>} : memref<2x8x32xf32, #tpu.memory_space<vmem>>, vector<2x1x32xf32>,
    %c2_i32 = arith.constant 2 : i32
    %c0_24 = arith.constant 0 : index
    %62 = arith.index_cast %c2_i32 : i32 to index
    %c0_25 = arith.constant 0 : index
    %63 = vector.load %arg1[%c0_24, %62, %c0_25] : memref<2x8x32xf32, #tpu.memory_space<vmem>>, vector<2x1x32xf32>
    %64 = vector.shape_cast %63 : vector<2x1x32xf32> to vector<2x32xf32>
    %cst_26 = arith.constant dense<0.000000e+00> : vector<2x128xf32>
    %65 = tpu.matmul %64, %3, %cst_26 {dimension_numbers = #tpu.dot_dimension_numbers<[1], [0], [0], [1], [0, 0, 1, 1], [], []>} : vector<2x32xf32>, vector<32x128xf32>, vector<2x128xf32> -> vector<2x128xf32>
    %66 = vector.broadcast %5 : vector<1x128xf32> to vector<2x128xf32>
    %67 = arith.addf %65, %66 : vector<2x128xf32>
    %cst_27 = arith.constant dense<0.000000e+00> : vector<2x128xf32>
    %68 = tpu.matmul %57, %4, %cst_27 {dimension_numbers = #tpu.dot_dimension_numbers<[1], [0], [0], [1], [0, 0, 1, 1], [], []>} : vector<2x32xf32>, vector<32x128xf32>, vector<2x128xf32> -> vector<2x128xf32>
    %69 = arith.addf %67, %68 : vector<2x128xf32>
    %70 = arith.negf %69 : vector<2x128xf32>
    %71 = math.exp %70 : vector<2x128xf32>
    %cst_28 = arith.constant 1.000000e+00 : f32
    %72 = vector.broadcast %cst_28 : f32 to vector<2x128xf32>
    %73 = arith.addf %72, %71 : vector<2x128xf32>
    %74 = arith.divf %72, %73 : vector<2x128xf32>
    %75 = vector.extract_strided_slice %74 {offsets = [0, 0], sizes = [2, 32], strides = [1, 1]} : vector<2x128xf32> to vector<2x32xf32>
    %76 = vector.extract_strided_slice %74 {offsets = [0, 32], sizes = [2, 32], strides = [1, 1]} : vector<2x128xf32> to vector<2x32xf32>
    %77 = vector.extract_strided_slice %74 {offsets = [0, 64], sizes = [2, 32], strides = [1, 1]} : vector<2x128xf32> to vector<2x32xf32>
    %78 = vector.extract_strided_slice %69 {offsets = [0, 96], sizes = [2, 32], strides = [1, 1]} : vector<2x128xf32> to vector<2x32xf32>
    %79 = math.tanh %78 : vector<2x32xf32>
    %80 = arith.mulf %76, %55 : vector<2x32xf32>
    %81 = arith.mulf %75, %79 : vector<2x32xf32>
    %82 = arith.addf %80, %81 : vector<2x32xf32>
    %83 = math.tanh %82 : vector<2x32xf32>
    %84 = arith.mulf %77, %83 : vector<2x32xf32>
    %c0_29 = arith.constant 0 : index
    %85 = arith.index_cast %c2_i32 : i32 to index
    %c0_30 = arith.constant 0 : index
    %86 = vector.load %arg7[%c0_29, %85, %c0_30] : memref<2x8x32xf32, #tpu.memory_space<vmem>>, vector<2x1x32xf32>
    %87 = vector.shape_cast %86 : vector<2x1x32xf32> to vector<2x32xf32>
    %88 = vector.shape_cast %84 : vector<2x32xf32> to vector<2x1x32xf32>
    tpu.vector_store %arg7[%c0_29, %85, %c0_30], %88 {strides = array<i32>} : memref<2x8x32xf32, #tpu.memory_space<vmem>>, vector<2x1x32xf32>,
    %c3_i32 = arith.constant 3 : i32
    %c0_31 = arith.constant 0 : index
    %89 = arith.index_cast %c3_i32 : i32 to index
    %c0_32 = arith.constant 0 : index
    %90 = vector.load %arg1[%c0_31, %89, %c0_32] : memref<2x8x32xf32, #tpu.memory_space<vmem>>, vector<2x1x32xf32>
    %91 = vector.shape_cast %90 : vector<2x1x32xf32> to vector<2x32xf32>
    %cst_33 = arith.constant dense<0.000000e+00> : vector<2x128xf32>
    %92 = tpu.matmul %91, %3, %cst_33 {dimension_numbers = #tpu.dot_dimension_numbers<[1], [0], [0], [1], [0, 0, 1, 1], [], []>} : vector<2x32xf32>, vector<32x128xf32>, vector<2x128xf32> -> vector<2x128xf32>
    %93 = vector.broadcast %5 : vector<1x128xf32> to vector<2x128xf32>
    %94 = arith.addf %92, %93 : vector<2x128xf32>
    %cst_34 = arith.constant dense<0.000000e+00> : vector<2x128xf32>
    %95 = tpu.matmul %84, %4, %cst_34 {dimension_numbers = #tpu.dot_dimension_numbers<[1], [0], [0], [1], [0, 0, 1, 1], [], []>} : vector<2x32xf32>, vector<32x128xf32>, vector<2x128xf32> -> vector<2x128xf32>
    %96 = arith.addf %94, %95 : vector<2x128xf32>
    %97 = arith.negf %96 : vector<2x128xf32>
    %98 = math.exp %97 : vector<2x128xf32>
    %cst_35 = arith.constant 1.000000e+00 : f32
    %99 = vector.broadcast %cst_35 : f32 to vector<2x128xf32>
    %100 = arith.addf %99, %98 : vector<2x128xf32>
    %101 = arith.divf %99, %100 : vector<2x128xf32>
    %102 = vector.extract_strided_slice %101 {offsets = [0, 0], sizes = [2, 32], strides = [1, 1]} : vector<2x128xf32> to vector<2x32xf32>
    %103 = vector.extract_strided_slice %101 {offsets = [0, 32], sizes = [2, 32], strides = [1, 1]} : vector<2x128xf32> to vector<2x32xf32>
    %104 = vector.extract_strided_slice %101 {offsets = [0, 64], sizes = [2, 32], strides = [1, 1]} : vector<2x128xf32> to vector<2x32xf32>
    %105 = vector.extract_strided_slice %96 {offsets = [0, 96], sizes = [2, 32], strides = [1, 1]} : vector<2x128xf32> to vector<2x32xf32>
    %106 = math.tanh %105 : vector<2x32xf32>
    %107 = arith.mulf %103, %82 : vector<2x32xf32>
    %108 = arith.mulf %102, %106 : vector<2x32xf32>
    %109 = arith.addf %107, %108 : vector<2x32xf32>
    %110 = math.tanh %109 : vector<2x32xf32>
    %111 = arith.mulf %104, %110 : vector<2x32xf32>
    %c0_36 = arith.constant 0 : index
    %112 = arith.index_cast %c3_i32 : i32 to index
    %c0_37 = arith.constant 0 : index
    %113 = vector.load %arg7[%c0_36, %112, %c0_37] : memref<2x8x32xf32, #tpu.memory_space<vmem>>, vector<2x1x32xf32>
    %114 = vector.shape_cast %113 : vector<2x1x32xf32> to vector<2x32xf32>
    %115 = vector.shape_cast %111 : vector<2x32xf32> to vector<2x1x32xf32>
    tpu.vector_store %arg7[%c0_36, %112, %c0_37], %115 {strides = array<i32>} : memref<2x8x32xf32, #tpu.memory_space<vmem>>, vector<2x1x32xf32>,
    %c4_i32 = arith.constant 4 : i32
    %c0_38 = arith.constant 0 : index
    %116 = arith.index_cast %c4_i32 : i32 to index
    %c0_39 = arith.constant 0 : index
    %117 = vector.load %arg1[%c0_38, %116, %c0_39] : memref<2x8x32xf32, #tpu.memory_space<vmem>>, vector<2x1x32xf32>
    %118 = vector.shape_cast %117 : vector<2x1x32xf32> to vector<2x32xf32>
    %cst_40 = arith.constant dense<0.000000e+00> : vector<2x128xf32>
    %119 = tpu.matmul %118, %3, %cst_40 {dimension_numbers = #tpu.dot_dimension_numbers<[1], [0], [0], [1], [0, 0, 1, 1], [], []>} : vector<2x32xf32>, vector<32x128xf32>, vector<2x128xf32> -> vector<2x128xf32>
    %120 = vector.broadcast %5 : vector<1x128xf32> to vector<2x128xf32>
    %121 = arith.addf %119, %120 : vector<2x128xf32>
    %cst_41 = arith.constant dense<0.000000e+00> : vector<2x128xf32>
    %122 = tpu.matmul %111, %4, %cst_41 {dimension_numbers = #tpu.dot_dimension_numbers<[1], [0], [0], [1], [0, 0, 1, 1], [], []>} : vector<2x32xf32>, vector<32x128xf32>, vector<2x128xf32> -> vector<2x128xf32>
    %123 = arith.addf %121, %122 : vector<2x128xf32>
    %124 = arith.negf %123 : vector<2x128xf32>
    %125 = math.exp %124 : vector<2x128xf32>
    %cst_42 = arith.constant 1.000000e+00 : f32
    %126 = vector.broadcast %cst_42 : f32 to vector<2x128xf32>
    %127 = arith.addf %126, %125 : vector<2x128xf32>
    %128 = arith.divf %126, %127 : vector<2x128xf32>
    %129 = vector.extract_strided_slice %128 {offsets = [0, 0], sizes = [2, 32], strides = [1, 1]} : vector<2x128xf32> to vector<2x32xf32>
    %130 = vector.extract_strided_slice %128 {offsets = [0, 32], sizes = [2, 32], strides = [1, 1]} : vector<2x128xf32> to vector<2x32xf32>
    %131 = vector.extract_strided_slice %128 {offsets = [0, 64], sizes = [2, 32], strides = [1, 1]} : vector<2x128xf32> to vector<2x32xf32>
    %132 = vector.extract_strided_slice %123 {offsets = [0, 96], sizes = [2, 32], strides = [1, 1]} : vector<2x128xf32> to vector<2x32xf32>
    %133 = math.tanh %132 : vector<2x32xf32>
    %134 = arith.mulf %130, %109 : vector<2x32xf32>
    %135 = arith.mulf %129, %133 : vector<2x32xf32>
    %136 = arith.addf %134, %135 : vector<2x32xf32>
    %137 = math.tanh %136 : vector<2x32xf32>
    %138 = arith.mulf %131, %137 : vector<2x32xf32>
    %c0_43 = arith.constant 0 : index
    %139 = arith.index_cast %c4_i32 : i32 to index
    %c0_44 = arith.constant 0 : index
    %140 = vector.load %arg7[%c0_43, %139, %c0_44] : memref<2x8x32xf32, #tpu.memory_space<vmem>>, vector<2x1x32xf32>
    %141 = vector.shape_cast %140 : vector<2x1x32xf32> to vector<2x32xf32>
    %142 = vector.shape_cast %138 : vector<2x32xf32> to vector<2x1x32xf32>
    tpu.vector_store %arg7[%c0_43, %139, %c0_44], %142 {strides = array<i32>} : memref<2x8x32xf32, #tpu.memory_space<vmem>>, vector<2x1x32xf32>,
    %c5_i32 = arith.constant 5 : i32
    %c0_45 = arith.constant 0 : index
    %143 = arith.index_cast %c5_i32 : i32 to index
    %c0_46 = arith.constant 0 : index
    %144 = vector.load %arg1[%c0_45, %143, %c0_46] : memref<2x8x32xf32, #tpu.memory_space<vmem>>, vector<2x1x32xf32>
    %145 = vector.shape_cast %144 : vector<2x1x32xf32> to vector<2x32xf32>
    %cst_47 = arith.constant dense<0.000000e+00> : vector<2x128xf32>
    %146 = tpu.matmul %145, %3, %cst_47 {dimension_numbers = #tpu.dot_dimension_numbers<[1], [0], [0], [1], [0, 0, 1, 1], [], []>} : vector<2x32xf32>, vector<32x128xf32>, vector<2x128xf32> -> vector<2x128xf32>
    %147 = vector.broadcast %5 : vector<1x128xf32> to vector<2x128xf32>
    %148 = arith.addf %146, %147 : vector<2x128xf32>
    %cst_48 = arith.constant dense<0.000000e+00> : vector<2x128xf32>
    %149 = tpu.matmul %138, %4, %cst_48 {dimension_numbers = #tpu.dot_dimension_numbers<[1], [0], [0], [1], [0, 0, 1, 1], [], []>} : vector<2x32xf32>, vector<32x128xf32>, vector<2x128xf32> -> vector<2x128xf32>
    %150 = arith.addf %148, %149 : vector<2x128xf32>
    %151 = arith.negf %150 : vector<2x128xf32>
    %152 = math.exp %151 : vector<2x128xf32>
    %cst_49 = arith.constant 1.000000e+00 : f32
    %153 = vector.broadcast %cst_49 : f32 to vector<2x128xf32>
    %154 = arith.addf %153, %152 : vector<2x128xf32>
    %155 = arith.divf %153, %154 : vector<2x128xf32>
    %156 = vector.extract_strided_slice %155 {offsets = [0, 0], sizes = [2, 32], strides = [1, 1]} : vector<2x128xf32> to vector<2x32xf32>
    %157 = vector.extract_strided_slice %155 {offsets = [0, 32], sizes = [2, 32], strides = [1, 1]} : vector<2x128xf32> to vector<2x32xf32>
    %158 = vector.extract_strided_slice %155 {offsets = [0, 64], sizes = [2, 32], strides = [1, 1]} : vector<2x128xf32> to vector<2x32xf32>
    %159 = vector.extract_strided_slice %150 {offsets = [0, 96], sizes = [2, 32], strides = [1, 1]} : vector<2x128xf32> to vector<2x32xf32>
    %160 = math.tanh %159 : vector<2x32xf32>
    %161 = arith.mulf %157, %136 : vector<2x32xf32>
    %162 = arith.mulf %156, %160 : vector<2x32xf32>
    %163 = arith.addf %161, %162 : vector<2x32xf32>
    %164 = math.tanh %163 : vector<2x32xf32>
    %165 = arith.mulf %158, %164 : vector<2x32xf32>
    %c0_50 = arith.constant 0 : index
    %166 = arith.index_cast %c5_i32 : i32 to index
    %c0_51 = arith.constant 0 : index
    %167 = vector.load %arg7[%c0_50, %166, %c0_51] : memref<2x8x32xf32, #tpu.memory_space<vmem>>, vector<2x1x32xf32>
    %168 = vector.shape_cast %167 : vector<2x1x32xf32> to vector<2x32xf32>
    %169 = vector.shape_cast %165 : vector<2x32xf32> to vector<2x1x32xf32>
    tpu.vector_store %arg7[%c0_50, %166, %c0_51], %169 {strides = array<i32>} : memref<2x8x32xf32, #tpu.memory_space<vmem>>, vector<2x1x32xf32>,
    %c6_i32 = arith.constant 6 : i32
    %c0_52 = arith.constant 0 : index
    %170 = arith.index_cast %c6_i32 : i32 to index
    %c0_53 = arith.constant 0 : index
    %171 = vector.load %arg1[%c0_52, %170, %c0_53] : memref<2x8x32xf32, #tpu.memory_space<vmem>>, vector<2x1x32xf32>
    %172 = vector.shape_cast %171 : vector<2x1x32xf32> to vector<2x32xf32>
    %cst_54 = arith.constant dense<0.000000e+00> : vector<2x128xf32>
    %173 = tpu.matmul %172, %3, %cst_54 {dimension_numbers = #tpu.dot_dimension_numbers<[1], [0], [0], [1], [0, 0, 1, 1], [], []>} : vector<2x32xf32>, vector<32x128xf32>, vector<2x128xf32> -> vector<2x128xf32>
    %174 = vector.broadcast %5 : vector<1x128xf32> to vector<2x128xf32>
    %175 = arith.addf %173, %174 : vector<2x128xf32>
    %cst_55 = arith.constant dense<0.000000e+00> : vector<2x128xf32>
    %176 = tpu.matmul %165, %4, %cst_55 {dimension_numbers = #tpu.dot_dimension_numbers<[1], [0], [0], [1], [0, 0, 1, 1], [], []>} : vector<2x32xf32>, vector<32x128xf32>, vector<2x128xf32> -> vector<2x128xf32>
    %177 = arith.addf %175, %176 : vector<2x128xf32>
    %178 = arith.negf %177 : vector<2x128xf32>
    %179 = math.exp %178 : vector<2x128xf32>
    %cst_56 = arith.constant 1.000000e+00 : f32
    %180 = vector.broadcast %cst_56 : f32 to vector<2x128xf32>
    %181 = arith.addf %180, %179 : vector<2x128xf32>
    %182 = arith.divf %180, %181 : vector<2x128xf32>
    %183 = vector.extract_strided_slice %182 {offsets = [0, 0], sizes = [2, 32], strides = [1, 1]} : vector<2x128xf32> to vector<2x32xf32>
    %184 = vector.extract_strided_slice %182 {offsets = [0, 32], sizes = [2, 32], strides = [1, 1]} : vector<2x128xf32> to vector<2x32xf32>
    %185 = vector.extract_strided_slice %182 {offsets = [0, 64], sizes = [2, 32], strides = [1, 1]} : vector<2x128xf32> to vector<2x32xf32>
    %186 = vector.extract_strided_slice %177 {offsets = [0, 96], sizes = [2, 32], strides = [1, 1]} : vector<2x128xf32> to vector<2x32xf32>
    %187 = math.tanh %186 : vector<2x32xf32>
    %188 = arith.mulf %184, %163 : vector<2x32xf32>
    %189 = arith.mulf %183, %187 : vector<2x32xf32>
    %190 = arith.addf %188, %189 : vector<2x32xf32>
    %191 = math.tanh %190 : vector<2x32xf32>
    %192 = arith.mulf %185, %191 : vector<2x32xf32>
    %c0_57 = arith.constant 0 : index
    %193 = arith.index_cast %c6_i32 : i32 to index
    %c0_58 = arith.constant 0 : index
    %194 = vector.load %arg7[%c0_57, %193, %c0_58] : memref<2x8x32xf32, #tpu.memory_space<vmem>>, vector<2x1x32xf32>
    %195 = vector.shape_cast %194 : vector<2x1x32xf32> to vector<2x32xf32>
    %196 = vector.shape_cast %192 : vector<2x32xf32> to vector<2x1x32xf32>
    tpu.vector_store %arg7[%c0_57, %193, %c0_58], %196 {strides = array<i32>} : memref<2x8x32xf32, #tpu.memory_space<vmem>>, vector<2x1x32xf32>,
    %c7_i32 = arith.constant 7 : i32
    %c0_59 = arith.constant 0 : index
    %197 = arith.index_cast %c7_i32 : i32 to index
    %c0_60 = arith.constant 0 : index
    %198 = vector.load %arg1[%c0_59, %197, %c0_60] : memref<2x8x32xf32, #tpu.memory_space<vmem>>, vector<2x1x32xf32>
    %199 = vector.shape_cast %198 : vector<2x1x32xf32> to vector<2x32xf32>
    %cst_61 = arith.constant dense<0.000000e+00> : vector<2x128xf32>
    %200 = tpu.matmul %199, %3, %cst_61 {dimension_numbers = #tpu.dot_dimension_numbers<[1], [0], [0], [1], [0, 0, 1, 1], [], []>} : vector<2x32xf32>, vector<32x128xf32>, vector<2x128xf32> -> vector<2x128xf32>
    %201 = vector.broadcast %5 : vector<1x128xf32> to vector<2x128xf32>
    %202 = arith.addf %200, %201 : vector<2x128xf32>
    %cst_62 = arith.constant dense<0.000000e+00> : vector<2x128xf32>
    %203 = tpu.matmul %192, %4, %cst_62 {dimension_numbers = #tpu.dot_dimension_numbers<[1], [0], [0], [1], [0, 0, 1, 1], [], []>} : vector<2x32xf32>, vector<32x128xf32>, vector<2x128xf32> -> vector<2x128xf32>
    %204 = arith.addf %202, %203 : vector<2x128xf32>
    %205 = arith.negf %204 : vector<2x128xf32>
    %206 = math.exp %205 : vector<2x128xf32>
    %cst_63 = arith.constant 1.000000e+00 : f32
    %207 = vector.broadcast %cst_63 : f32 to vector<2x128xf32>
    %208 = arith.addf %207, %206 : vector<2x128xf32>
    %209 = arith.divf %207, %208 : vector<2x128xf32>
    %210 = vector.extract_strided_slice %209 {offsets = [0, 0], sizes = [2, 32], strides = [1, 1]} : vector<2x128xf32> to vector<2x32xf32>
    %211 = vector.extract_strided_slice %209 {offsets = [0, 32], sizes = [2, 32], strides = [1, 1]} : vector<2x128xf32> to vector<2x32xf32>
    %212 = vector.extract_strided_slice %209 {offsets = [0, 64], sizes = [2, 32], strides = [1, 1]} : vector<2x128xf32> to vector<2x32xf32>
    %213 = vector.extract_strided_slice %204 {offsets = [0, 96], sizes = [2, 32], strides = [1, 1]} : vector<2x128xf32> to vector<2x32xf32>
    %214 = math.tanh %213 : vector<2x32xf32>
    %215 = arith.mulf %211, %190 : vector<2x32xf32>
    %216 = arith.mulf %210, %214 : vector<2x32xf32>
    %217 = arith.addf %215, %216 : vector<2x32xf32>
    %218 = math.tanh %217 : vector<2x32xf32>
    %219 = arith.mulf %212, %218 : vector<2x32xf32>
    %c0_64 = arith.constant 0 : index
    %220 = arith.index_cast %c7_i32 : i32 to index
    %c0_65 = arith.constant 0 : index
    %221 = vector.load %arg7[%c0_64, %220, %c0_65] : memref<2x8x32xf32, #tpu.memory_space<vmem>>, vector<2x1x32xf32>
    %222 = vector.shape_cast %221 : vector<2x1x32xf32> to vector<2x32xf32>
    %223 = vector.shape_cast %219 : vector<2x32xf32> to vector<2x1x32xf32>
    tpu.vector_store %arg7[%c0_64, %220, %c0_65], %223 {strides = array<i32>} : memref<2x8x32xf32, #tpu.memory_space<vmem>>, vector<2x1x32xf32>,
    %c8_i32 = arith.constant 8 : i32
    %c0_66 = arith.constant 0 : index
    %c0_67 = arith.constant 0 : index
    %224 = vector.load %arg10[%c0_66, %c0_67] : memref<2x32xf32, #tpu.memory_space<vmem>>, vector<2x32xf32>
    tpu.vector_store %arg10[%c0_66, %c0_67], %219 {strides = array<i32>} : memref<2x32xf32, #tpu.memory_space<vmem>>, vector<2x32xf32>,
    %c0_68 = arith.constant 0 : index
    %c0_69 = arith.constant 0 : index
    %225 = vector.load %arg11[%c0_68, %c0_69] : memref<2x32xf32, #tpu.memory_space<vmem>>, vector<2x32xf32>
    tpu.vector_store %arg11[%c0_68, %c0_69], %217 {strides = array<i32>} : memref<2x32xf32, #tpu.memory_space<vmem>>, vector<2x32xf32>,
    %c1_i32_70 = arith.constant 1 : i32
    %226 = arith.cmpi eq, %arg0, %c1_i32_70 : i32
    %227 = arith.extui %226 : i1 to i32
    %c0_i32_71 = arith.constant 0 : i32
    %228 = arith.cmpi ne, %227, %c0_i32_71 : i32
    scf.if %228 {
      %c0_72 = arith.constant 0 : index
      %c0_73 = arith.constant 0 : index
      %229 = vector.load %arg8[%c0_72, %c0_73] : memref<2x32xf32, #tpu.memory_space<vmem>>, vector<2x32xf32>
      tpu.vector_store %arg8[%c0_72, %c0_73], %219 {strides = array<i32>} : memref<2x32xf32, #tpu.memory_space<vmem>>, vector<2x32xf32>,
      %c0_74 = arith.constant 0 : index
      %c0_75 = arith.constant 0 : index
      %230 = vector.load %arg9[%c0_74, %c0_75] : memref<2x32xf32, #tpu.memory_space<vmem>>, vector<2x32xf32>
      tpu.vector_store %arg9[%c0_74, %c0_75], %217 {strides = array<i32>} : memref<2x32xf32, #tpu.memory_space<vmem>>, vector<2x32xf32>,
    } else {
    }
    return
  }
  func.func @transform_0(%arg0: i32) -> (i32, i32, i32) {
    %c0_i32 = arith.constant 0 : i32
    %c0_i32_0 = arith.constant 0 : i32
    %c0_i32_1 = arith.constant 0 : i32
    return %c0_i32, %arg0, %c0_i32_0 : i32, i32, i32
  }
  func.func @transform_1(%arg0: i32) -> (i32, i32) {
    %c0_i32 = arith.constant 0 : i32
    %c0_i32_0 = arith.constant 0 : i32
    %c0_i32_1 = arith.constant 0 : i32
    return %c0_i32, %c0_i32_0 : i32, i32
  }
  func.func @transform_2(%arg0: i32) -> (i32, i32) {
    %c0_i32 = arith.constant 0 : i32
    %c0_i32_0 = arith.constant 0 : i32
    %c0_i32_1 = arith.constant 0 : i32
    return %c0_i32, %c0_i32_0 : i32, i32
  }
  func.func @transform_3(%arg0: i32) -> (i32, i32) {
    %c0_i32 = arith.constant 0 : i32
    %c0_i32_0 = arith.constant 0 : i32
    %c0_i32_1 = arith.constant 0 : i32
    return %c0_i32, %c0_i32_0 : i32, i32
  }
  func.func @transform_4(%arg0: i32) -> (i32, i32) {
    %c0_i32 = arith.constant 0 : i32
    %c0_i32_0 = arith.constant 0 : i32
    %c0_i32_1 = arith.constant 0 : i32
    return %c0_i32, %c0_i32_0 : i32, i32
  }
  func.func @transform_5(%arg0: i32) -> (i32, i32) {
    %c0_i32 = arith.constant 0 : i32
    %c0_i32_0 = arith.constant 0 : i32
    %c0_i32_1 = arith.constant 0 : i32
    return %c0_i32, %c0_i32_0 : i32, i32
  }
  func.func @transform_6(%arg0: i32) -> (i32, i32, i32) {
    %c0_i32 = arith.constant 0 : i32
    %c0_i32_0 = arith.constant 0 : i32
    %c0_i32_1 = arith.constant 0 : i32
    return %c0_i32, %arg0, %c0_i32_0 : i32, i32, i32
  }
  func.func @transform_7(%arg0: i32) -> (i32, i32) {
    %c0_i32 = arith.constant 0 : i32
    %c0_i32_0 = arith.constant 0 : i32
    %c0_i32_1 = arith.constant 0 : i32
    return %c0_i32, %c0_i32_0 : i32, i32
  }
  func.func @transform_8(%arg0: i32) -> (i32, i32) {
    %c0_i32 = arith.constant 0 : i32
    %c0_i32_0 = arith.constant 0 : i32
    %c0_i32_1 = arith.constant 0 : i32
    return %c0_i32, %c0_i32_0 : i32, i32
  }
}

</mosaic_0001>

<llo_original>
// kernel: lstm_pallas.1
$region0: #{lstm_pallas.1}
  #allocation0 [shape = 'u32[]', space=smem, size = 0x4, offset = 0x4, fixed_abs, tag = 'smem constant byte address 0x4 - core index']
  #allocation1 [shape = 'u32[144,128]{1,0:T(1,128)}', space=vmem, size = 0x12000, scoped, tag = 'internal scratch']
  #allocation2 [shape = 'f32[2,32]{1,0:T(2,128)}', space=vmem, size = 0x400, scoped, tag = 'scratch operand']
  #allocation3 [shape = 'f32[2,32]{1,0:T(2,128)}', space=vmem, size = 0x400, scoped, tag = 'scratch operand']
  %s0 = inlined_call_operand.hbm [shape: f32[2,16,32], index: 0, kind: input, shape index: {}]
  %s1 = inlined_call_operand.hbm [shape: f32[32,128], index: 1, kind: input, shape index: {}]
  %s2 = inlined_call_operand.hbm [shape: f32[32,128], index: 2, kind: input, shape index: {}]
  %s3 = inlined_call_operand.vmem [shape: f32[1,128], index: 3, kind: input, shape index: {}]
  %s4 = inlined_call_operand.vmem [shape: f32[2,32], index: 4, kind: input, shape index: {}]
  %s5 = inlined_call_operand.vmem [shape: f32[2,32], index: 5, kind: input, shape index: {}]
  %s6 = inlined_call_operand.hbm [shape: f32[2,16,32], index: 6, kind: output, shape index: {0}]
  %s7 = inlined_call_operand.hbm [shape: f32[2,32], index: 7, kind: output, shape index: {1}]
  %s8 = inlined_call_operand.hbm [shape: f32[2,32], index: 8, kind: output, shape index: {2}]
  %9 = xla_tuple %s6, %s7, %s8
  %s10 = sld [smem:[#allocation0]]
  $region93: #{lstm_pallas.1} parent=0
    _
  %s12 = ssub.s32 1, %s10
  %s13 = scalar_select 0, %s12, %s10
  $region1: #{lstm_pallas.1} parent=0
    #allocation4 [shape = 'u8[16384]{0}', space=vmem, size = 0x4000, scoped, tag = 'input window, operand 0']
    #allocation5 [shape = 's32[2]{0}', space=sflag, size = 0x8, scoped, tag = 'scoped memory for lstm_pallas.1']
    #allocation6 [shape = 's32[2]{0}', space=sflag, size = 0x8, scoped, tag = 'scoped memory for lstm_pallas.1']
    #allocation7 [shape = 'u8[16384]{0}', space=vmem, size = 0x4000, scoped, tag = 'input window, operand 1, single buffered']
    #allocation8 [shape = 's32[1]{0}', space=sflag, size = 0x4, scoped, tag = 'scoped memory for lstm_pallas.1']
    #allocation9 [shape = 'u8[16384]{0}', space=vmem, size = 0x4000, scoped, tag = 'input window, operand 2, single buffered']
    #allocation10 [shape = 'u8[16384]{0}', space=vmem, size = 0x4000, scoped, tag = 'output window, operand 0']
    #allocation11 [shape = 'u8[1024]{0}', space=vmem, size = 0x400, scoped, tag = 'output window, operand 1, single buffered']
    #allocation12 [shape = 's32[1]{0}', space=sflag, size = 0x4, scoped, tag = 'scoped memory for lstm_pallas.1']
    #allocation13 [shape = 'u8[1024]{0}', space=vmem, size = 0x400, scoped, tag = 'output window, operand 2, single buffered']
    %14 = vsyncpa [#allocation5], 0
    %s15 = scalar_lea.sflag [#allocation5], 1
    %16 = vsyncpa %s15, 0
    %17 = vsyncpa [#allocation8], 0
    %18 = vsyncpa [#allocation6], 0
    %s19 = scalar_lea.sflag [#allocation6], 1
    %20 = vsyncpa %s19, 0
    %21 = vsyncpa [#allocation12], 0
    loop: start=0, step=1, limit=4
    $region2: #{lstm_pallas.1} parent=1 // loop_pre_header
      _
    $region3: #{lstm_pallas.1} parent=1 // loop_header
      %s23 = sphi 0, %s27
      %p24 = scmp.ge.s32.totalorder %s23, 4
      %s33 = sphi 0, %s35
      %s36 = sphi 0, %s33
      %s37 = sphi 0, %s36
      %s53 = sphi 0, %s37
      %s57 = sphi 0, %s57
      %s59 = sphi 0, %s57
      %s60 = sphi 0, %s59
      %s74 = sphi 0, %s60
      %s78 = sphi 0, %s78
      %s80 = sphi 0, %s78
      %s81 = sphi 0, %s80
      %s95 = sphi 0, %s81
      %s99 = sphi 0, %s99
      %s101 = sphi 0, %s99
      %s102 = sphi 0, %s101
      %s116 = sphi 0, %s102
      %s120 = sphi 0, %s120
      %s122 = sphi 0, %s120
      %s123 = sphi 0, %s122
      %s137 = sphi 0, %s123
      %s141 = sphi 0, %s141
      %s143 = sphi 0, %s141
      %s144 = sphi 0, %s143
      %s158 = sphi 0, %s144
      %s164 = sphi 0, %s166
      %s167 = sphi 0, %s164
      %s168 = sphi 0, %s167
      %s184 = sphi 0, %s168
      %s188 = sphi 0, %s188
      %s190 = sphi 0, %s188
      %s191 = sphi 0, %s190
      %s205 = sphi 0, %s191
      %s209 = sphi 0, %s209
      %s211 = sphi 0, %s209
      %s212 = sphi 0, %s211
      %s226 = sphi 0, %s212
    $region4: #{lstm_pallas.1} parent=1 // loop_header_branch
      %26 = sbr.rel (%p24) target = $region8
    $region5: #{lstm_pallas.1} parent=1 // loop_body
      %s28 = ssub.s32 %s23, 1
      %s29 = ssub.s32 %s23, 2
      %s30 = sadd.s32 %s23, 1
      %s31 = ssub.s32 %s23, %s30
      %p32 = scmp.eq.s32.totalorder %s31, 0
      %s34 = sadd.s32 %s33, 1
      %s35 = scalar_select %p32, %s33, %s34
      %p38 = pneg %p32
      %p39 = scmp.eq.s32.totalorder %s23, 1
      %p40 = por %p38, %p39
      %p41 = scmp.ne.s32.totalorder %s33, %s36
      %p42 = scmp.eq.s32.totalorder %s23, 0
      %p43 = por %p41, %p42
      %p44 = scmp.ne.s32.totalorder %s33, %s36
      %p45 = scmp.eq.s32.totalorder %s28, 1
      %p46 = por %p44, %p45
      %p47 = scmp.ne.s32.totalorder %s36, %s37
      %p48 = scmp.eq.s32.totalorder %s28, 0
      %p49 = por %p47, %p48
      %p50 = scmp.ne.s32.totalorder %s36, %s37
      %p51 = scmp.eq.s32.totalorder %s29, 1
      %p52 = por %p50, %p51
      %p54 = scmp.ne.s32.totalorder %s37, %s53
      %p55 = scmp.eq.s32.totalorder %s29, 0
      %p56 = por %p54, %p55
      %s58 = sadd.s32 %s57, 1
      %p61 = scmp.eq.s32.totalorder %s23, 1
      %p62 = scmp.ne.s32.totalorder %s57, %s59
      %p63 = scmp.eq.s32.totalorder %s23, 0
      %p64 = por %p62, %p63
      %p65 = scmp.ne.s32.totalorder %s57, %s59
      %p66 = scmp.eq.s32.totalorder %s28, 1
      %p67 = por %p65, %p66
      %p68 = scmp.ne.s32.totalorder %s59, %s60
      %p69 = scmp.eq.s32.totalorder %s28, 0
      %p70 = por %p68, %p69
      %p71 = scmp.ne.s32.totalorder %s59, %s60
      %p72 = scmp.eq.s32.totalorder %s29, 1
      %p73 = por %p71, %p72
      %p75 = scmp.ne.s32.totalorder %s60, %s74
      %p76 = scmp.eq.s32.totalorder %s29, 0
      %p77 = por %p75, %p76
      %s79 = sadd.s32 %s78, 1
      %p82 = scmp.eq.s32.totalorder %s23, 1
      %p83 = scmp.ne.s32.totalorder %s78, %s80
      %p84 = scmp.eq.s32.totalorder %s23, 0
      %p85 = por %p83, %p84
      %p86 = scmp.ne.s32.totalorder %s78, %s80
      %p87 = scmp.eq.s32.totalorder %s28, 1
      %p88 = por %p86, %p87
      %p89 = scmp.ne.s32.totalorder %s80, %s81
      %p90 = scmp.eq.s32.totalorder %s28, 0
      %p91 = por %p89, %p90
      %p92 = scmp.ne.s32.totalorder %s80, %s81
      %p93 = scmp.eq.s32.totalorder %s29, 1
      %p94 = por %p92, %p93
      %p96 = scmp.ne.s32.totalorder %s81, %s95
      %p97 = scmp.eq.s32.totalorder %s29, 0
      %p98 = por %p96, %p97
      %s100 = sadd.s32 %s99, 1
      %p103 = scmp.eq.s32.totalorder %s23, 1
      %p104 = scmp.ne.s32.totalorder %s99, %s101
      %p105 = scmp.eq.s32.totalorder %s23, 0
      %p106 = por %p104, %p105
      %p107 = scmp.ne.s32.totalorder %s99, %s101
      %p108 = scmp.eq.s32.totalorder %s28, 1
      %p109 = por %p107, %p108
      %p110 = scmp.ne.s32.totalorder %s101, %s102
      %p111 = scmp.eq.s32.totalorder %s28, 0
      %p112 = por %p110, %p111
      %p113 = scmp.ne.s32.totalorder %s101, %s102
      %p114 = scmp.eq.s32.totalorder %s29, 1
      %p115 = por %p113, %p114
      %p117 = scmp.ne.s32.totalorder %s102, %s116
      %p118 = scmp.eq.s32.totalorder %s29, 0
      %p119 = por %p117, %p118
      %s121 = sadd.s32 %s120, 1
      %p124 = scmp.eq.s32.totalorder %s23, 1
      %p125 = scmp.ne.s32.totalorder %s120, %s122
      %p126 = scmp.eq.s32.totalorder %s23, 0
      %p127 = por %p125, %p126
      %p128 = scmp.ne.s32.totalorder %s120, %s122
      %p129 = scmp.eq.s32.totalorder %s28, 1
      %p130 = por %p128, %p129
      %p131 = scmp.ne.s32.totalorder %s122, %s123
      %p132 = scmp.eq.s32.totalorder %s28, 0
      %p133 = por %p131, %p132
      %p134 = scmp.ne.s32.totalorder %s122, %s123
      %p135 = scmp.eq.s32.totalorder %s29, 1
      %p136 = por %p134, %p135
      %p138 = scmp.ne.s32.totalorder %s123, %s137
      %p139 = scmp.eq.s32.totalorder %s29, 0
      %p140 = por %p138, %p139
      %s142 = sadd.s32 %s141, 1
      %p145 = scmp.eq.s32.totalorder %s23, 1
      %p146 = scmp.ne.s32.totalorder %s141, %s143
      %p147 = scmp.eq.s32.totalorder %s23, 0
      %p148 = por %p146, %p147
      %p149 = scmp.ne.s32.totalorder %s141, %s143
      %p150 = scmp.eq.s32.totalorder %s28, 1
      %p151 = por %p149, %p150
      %p152 = scmp.ne.s32.totalorder %s143, %s144
      %p153 = scmp.eq.s32.totalorder %s28, 0
      %p154 = por %p152, %p153
      %p155 = scmp.ne.s32.totalorder %s143, %s144
      %p156 = scmp.eq.s32.totalorder %s29, 1
      %p157 = por %p155, %p156
      %p159 = scmp.ne.s32.totalorder %s144, %s158
      %p160 = scmp.eq.s32.totalorder %s29, 0
      %p161 = por %p159, %p160
      %s162 = ssub.s32 %s23, %s30
      %p163 = scmp.eq.s32.totalorder %s162, 0
      %s165 = sadd.s32 %s164, 1
      %s166 = scalar_select %p163, %s164, %s165
      %p169 = pneg %p163
      %p170 = scmp.eq.s32.totalorder %s23, 1
      %p171 = por %p169, %p170
      %p172 = scmp.ne.s32.totalorder %s164, %s167
      %p173 = scmp.eq.s32.totalorder %s23, 0
      %p174 = por %p172, %p173
      %p175 = scmp.ne.s32.totalorder %s164, %s167
      %p176 = scmp.eq.s32.totalorder %s28, 1
      %p177 = por %p175, %p176
      %p178 = scmp.ne.s32.totalorder %s167, %s168
      %p179 = scmp.eq.s32.totalorder %s28, 0
      %p180 = por %p178, %p179
      %p181 = scmp.ne.s32.totalorder %s167, %s168
      %p182 = scmp.eq.s32.totalorder %s29, 1
      %p183 = por %p181, %p182
      %p185 = scmp.ne.s32.totalorder %s168, %s184
      %p186 = scmp.eq.s32.totalorder %s29, 0
      %p187 = por %p185, %p186
      %s189 = sadd.s32 %s188, 1
      %p192 = scmp.eq.s32.totalorder %s23, 1
      %p193 = scmp.ne.s32.totalorder %s188, %s190
      %p194 = scmp.eq.s32.totalorder %s23, 0
      %p195 = por %p193, %p194
      %p196 = scmp.ne.s32.totalorder %s188, %s190
      %p197 = scmp.eq.s32.totalorder %s28, 1
      %p198 = por %p196, %p197
      %p199 = scmp.ne.s32.totalorder %s190, %s191
      %p200 = scmp.eq.s32.totalorder %s28, 0
      %p201 = por %p199, %p200
      %p202 = scmp.ne.s32.totalorder %s190, %s191
      %p203 = scmp.eq.s32.totalorder %s29, 1
      %p204 = por %p202, %p203
      %p206 = scmp.ne.s32.totalorder %s191, %s205
      %p207 = scmp.eq.s32.totalorder %s29, 0
      %p208 = por %p206, %p207
      %s210 = sadd.s32 %s209, 1
      %p213 = scmp.eq.s32.totalorder %s23, 1
      %p214 = scmp.ne.s32.totalorder %s209, %s211
      %p215 = scmp.eq.s32.totalorder %s23, 0
      %p216 = por %p214, %p215
      %p217 = scmp.ne.s32.totalorder %s209, %s211
      %p218 = scmp.eq.s32.totalorder %s28, 1
      %p219 = por %p217, %p218
      %p220 = scmp.ne.s32.totalorder %s211, %s212
      %p221 = scmp.eq.s32.totalorder %s28, 0
      %p222 = por %p220, %p221
      %p223 = scmp.ne.s32.totalorder %s211, %s212
      %p224 = scmp.eq.s32.totalorder %s29, 1
      %p225 = por %p223, %p224
      %p227 = scmp.ne.s32.totalorder %s212, %s226
      %p228 = scmp.eq.s32.totalorder %s29, 0
      %p229 = por %p227, %p228
      %p230 = scmp.le.s32.totalorder 1, %s23
      %p231 = scmp.lt.s32.totalorder %s23, 3
      %p232 = pnand %p230, %p231
      %p233 = pneg %p232
      // Predicated region
      $region9: #{lstm_pallas.1} parent=5 // pred_check
        _
      $region10: #{lstm_pallas.1} parent=5 // pred_check_branch
        %235 = sbr.rel (%p232) target = $region12
      $region11: #{lstm_pallas.1} parent=5 // pred_region
        %s236 = ssub.s32 %s23, 1
        // Predicated region
        $region13: #{lstm_pallas.1} parent=11 // pred_check
          %p237 = pneg %p70
        $region14: #{lstm_pallas.1} parent=11 // pred_check_branch
          %239 = sbr.rel (%p237) target = $region16
        $region15: #{lstm_pallas.1} parent=11 // pred_region
          %s241 = ssub.s32 512, 512
          %242 = vsyncadd [#allocation8], %s241
          %s243 = sshll.u32 [#allocation7], 4
          %s244 = int_to_ptr.vmem [resolvable:$true] %s243
          %249 = dma.hbm_to_vmem [thread:$0]  %s1, 512, %s244, [#allocation8], 128, 128, 8
        $region16: #{lstm_pallas.1} parent=11 // pred_fallthru
          _
        // Predicated region
        $region17: #{lstm_pallas.1} parent=11 // pred_check
          %p250 = pneg %p91
        $region18: #{lstm_pallas.1} parent=11 // pred_check_branch
          %252 = sbr.rel (%p250) target = $region20
        $region19: #{lstm_pallas.1} parent=11 // pred_region
          %s254 = ssub.s32 512, 512
          %255 = vsyncadd [#allocation8], %s254
          %s256 = sshll.u32 [#allocation9], 4
          %s257 = int_to_ptr.vmem [resolvable:$true] %s256
          %262 = dma.hbm_to_vmem [thread:$0]  %s2, 512, %s257, [#allocation8], 128, 128, 8
        $region20: #{lstm_pallas.1} parent=11 // pred_fallthru
          _
        // Predicated region
        $region21: #{lstm_pallas.1} parent=11 // pred_check
          %p263 = pneg %p112
        $region22: #{lstm_pallas.1} parent=11 // pred_check_branch
          %265 = sbr.rel (%p263) target = $region24
        $region23: #{lstm_pallas.1} parent=11 // pred_region
          _
        $region24: #{lstm_pallas.1} parent=11 // pred_fallthru
          _
        // Predicated region
        $region25: #{lstm_pallas.1} parent=11 // pred_check
          %p266 = pneg %p133
        $region26: #{lstm_pallas.1} parent=11 // pred_check_branch
          %268 = sbr.rel (%p266) target = $region28
        $region27: #{lstm_pallas.1} parent=11 // pred_region
          _
        $region28: #{lstm_pallas.1} parent=11 // pred_fallthru
          _
        // Predicated region
        $region29: #{lstm_pallas.1} parent=11 // pred_check
          %p269 = pneg %p154
        $region30: #{lstm_pallas.1} parent=11 // pred_check_branch
          %271 = sbr.rel (%p269) target = $region32
        $region31: #{lstm_pallas.1} parent=11 // pred_region
          _
        $region32: #{lstm_pallas.1} parent=11 // pred_fallthru
          _
      $region12: #{lstm_pallas.1} parent=5 // pred_fallthru
        _
      %p272 = scmp.lt.s32.totalorder %s23, 2
      // Predicated region
      $region33: #{lstm_pallas.1} parent=5 // pred_check
        %p273 = pneg %p272
      $region34: #{lstm_pallas.1} parent=5 // pred_check_branch
        %275 = sbr.rel (%p273) target = $region36
      $region35: #{lstm_pallas.1} parent=5 // pred_region
        // Predicated region
        $region37: #{lstm_pallas.1} parent=35 // pred_check
          %p276 = pneg %p43
        $region38: #{lstm_pallas.1} parent=35 // pred_check_branch
          %278 = sbr.rel (%p276) target = $region40
        $region39: #{lstm_pallas.1} parent=35 // pred_region
          %s279 = sand.u32 %s33, 1
          %s280 = scalar_lea.sflag [#allocation5], %s279
          %s281 = sand.u32 %s33, 1
          %s282 = smul.addr %s281, 16
          %s283 = scalar_lea.vmem [#allocation4], %s282
          %s285 = ssub.s32 256, 256
          %286 = vsyncadd %s280, %s285
          %s287 = smul.addr %s23, 128
          %s288 = scalar_lea.hbm %s0, %s287
          %s289 = sshll.u32 %s283, 4
          %s290 = int_to_ptr.vmem [resolvable:$true] %s289
          %295 = dma.hbm_to_vmem [thread:$0]  %s288, 256, %s290, %s280, 256, 128, 8
        $region40: #{lstm_pallas.1} parent=35 // pred_fallthru
          _
      $region36: #{lstm_pallas.1} parent=5 // pred_fallthru
        _
      %p296 = scmp.le.s32.totalorder 1, %s23
      %p297 = scmp.lt.s32.totalorder %s23, 3
      %p298 = pnand %p296, %p297
      %p299 = pneg %p298
      // Predicated region
      $region41: #{lstm_pallas.1} parent=5 // pred_check
        _
      $region42: #{lstm_pallas.1} parent=5 // pred_check_branch
        %301 = sbr.rel (%p298) target = $region44
      $region43: #{lstm_pallas.1} parent=5 // pred_region
        %s302 = ssub.s32 %s23, 1
        %s303 = sand.u32 %s36, 1
        %s304 = scalar_lea.sflag [#allocation5], %s303
        %s305 = sand.u32 %s36, 1
        %s306 = smul.addr %s305, 16
        %s307 = scalar_lea.vmem [#allocation4], %s306
        // Predicated region
        $region45: #{lstm_pallas.1} parent=43 // pred_check
          %p308 = pneg %p49
        $region46: #{lstm_pallas.1} parent=43 // pred_check_branch
          %310 = sbr.rel (%p308) target = $region48
        $region47: #{lstm_pallas.1} parent=43 // pred_region
          %311 = dma.done %s304, 256
        $region48: #{lstm_pallas.1} parent=43 // pred_fallthru
          _
        // Predicated region
        $region49: #{lstm_pallas.1} parent=43 // pred_check
          %p312 = pneg %p70
        $region50: #{lstm_pallas.1} parent=43 // pred_check_branch
          %314 = sbr.rel (%p312) target = $region52
        $region51: #{lstm_pallas.1} parent=43 // pred_region
          %315 = dma.done [#allocation8], 512
        $region52: #{lstm_pallas.1} parent=43 // pred_fallthru
          _
        // Predicated region
        $region53: #{lstm_pallas.1} parent=43 // pred_check
          %p316 = pneg %p91
        $region54: #{lstm_pallas.1} parent=43 // pred_check_branch
          %318 = sbr.rel (%p316) target = $region56
        $region55: #{lstm_pallas.1} parent=43 // pred_region
          %319 = dma.done [#allocation8], 512
        $region56: #{lstm_pallas.1} parent=43 // pred_fallthru
          _
        %s320 = sand.u32 %s36, 1
        %s321 = scalar_lea.sflag [#allocation5], %s320
        %s322 = sand.u32 %s36, 1
        %s323 = smul.addr %s322, 16
        %s324 = scalar_lea.vmem [#allocation4], %s323
        %p325 = pneg %p49
        %p326 = pneg %p46
        %p327 = pneg %p70
        %p328 = pneg %p67
        %p329 = pneg %p91
        %p330 = pneg %p88
        %p331 = pneg %p112
        %p332 = pneg %p109
        %p333 = pneg %p133
        %p334 = pneg %p130
        %p335 = pneg %p154
        %p336 = pneg %p151
        %p337 = pneg %p180
        %p338 = pneg %p177
        %s339 = sand.u32 %s167, 1
        %s340 = scalar_lea.sflag [#allocation6], %s339
        %s341 = sand.u32 %s167, 1
        %s342 = smul.addr %s341, 16
        %s343 = scalar_lea.vmem [#allocation10], %s342
        %p344 = pneg %p201
        %p345 = pneg %p198
        %p346 = pneg %p222
        %p347 = pneg %p219
        %p348 = scmp.eq.s32.totalorder %s28, 0
        // Predicated region
        $region57: #{lstm_pallas.1} parent=43 // pred_check
          %p349 = pneg %p348
        $region58: #{lstm_pallas.1} parent=43 // pred_check_branch
          %351 = sbr.rel (%p349) target = $region60
        $region59: #{lstm_pallas.1} parent=43 // pred_region
          %v352 = vld [vmem:[%s4] sm:$0x3]
          %vm353 = vcmask 254976
          %354 = vst.msk [vmem:[#allocation2] sm:$0x3] %vm353, %v352
          %v355 = vld [vmem:[%s5] sm:$0x3]
          %356 = vst.msk [vmem:[#allocation3] sm:$0x3] %vm353, %v355
        $region60: #{lstm_pallas.1} parent=43 // pred_fallthru
          _
        %v357 = vld [vmem:[#allocation7] sm:$0xff]
        %v358 = vld [vmem:[#allocation7 + $0x8] sm:$0xff]
        %v359 = vld [vmem:[#allocation7 + $0x10] sm:$0xff]
        %v360 = vld [vmem:[#allocation7 + $0x18] sm:$0xff]
        %v361 = vld [vmem:[#allocation9] sm:$0xff]
        %v362 = vld [vmem:[#allocation9 + $0x8] sm:$0xff]
        %v363 = vld [vmem:[#allocation9 + $0x10] sm:$0xff]
        %v364 = vld [vmem:[#allocation9 + $0x18] sm:$0xff]
        %v365 = vld [vmem:[%s3] sm:$0x1]
        %v366 = vld [vmem:[#allocation2] sm:$0x3]
        %v367 = vld [vmem:[#allocation3] sm:$0x3]
        %v368 = vld [vmem:[%s307] sm:$0x1]
        %v369 = vld [vmem:[%s307 + $0x8] sm:$0x1]
        %v371 = vlaneseq
        %v372 = vshrl.u32 %v371, 7
        %v373 = vsub.s32 0, %v372
        %v374 = vrot.slane %v365, %v373
        %v378 = vrot.slane %v369, 7
        %vm379 = vcmask 1041409
        %v380 = vsel %vm379, %v378, %v368
        %vm381 = vcmask 261120
        %v382 = vsel %vm381, %v380, 0
        %384 = vmatprep.subr.mxu0 0.0
        %385 = vmatpush1.msra.mxu0 %v357
        %386 = vmatprep.subr.mxu0 0.0
        %387 = vmatpush1.msra.mxu0 %v358
        %388 = vmatprep.subr.mxu0 0.0
        %389 = vmatpush1.msra.mxu0 %v359
        %390 = vmatprep.subr.mxu0 0.0
        %391 = vmatpush1.msra.mxu0 %v360
        %392 = vmatprep.subr.mxu0 0.0
        %393 = vmatpush1.msra.mxu0 0.0
        %394 = vmatprep.subr.mxu0 0.0
        %395 = vmatpush1.msra.mxu0 0.0
        %396 = vmatprep.subr.mxu0 0.0
        %397 = vmatpush1.msra.mxu0 0.0
        %398 = vmatprep.subr.mxu0 0.0
        %399 = vmatpush1.msra.mxu0 0.0
        %400 = vmatprep.subr.mxu0 0.0
        %401 = vmatpush1.msra.mxu0 0.0
        %402 = vmatprep.subr.mxu0 0.0
        %403 = vmatpush1.msra.mxu0 0.0
        %404 = vmatprep.subr.mxu0 0.0
        %405 = vmatpush1.msra.mxu0 0.0
        %406 = vmatprep.subr.mxu0 0.0
        %407 = vmatpush1.msra.mxu0 0.0
        %408 = vmatprep.subr.mxu0 0.0
        %409 = vmatpush1.msra.mxu0 0.0
        %410 = vmatprep.subr.mxu0 0.0
        %411 = vmatpush1.msra.mxu0 0.0
        %412 = vmatprep.subr.mxu0 0.0
        %413 = vmatpush1.msra.mxu0 0.0
        %414 = vmatprep.subr.mxu0 0.0
        %415 = vmatpush1.msra.mxu0 0.0
        %416 = vmatprep.subr.mxu0 0.0
        %417 = vmatpush1.msra.mxu0 0.0
        %418 = vmatprep.subr.mxu0 0.0
        %419 = vmatpush1.msra.mxu0 0.0
        %420 = vmatprep.subr.mxu0 0.0
        %421 = vmatpush1.msra.mxu0 0.0
        %422 = vmatprep.subr.mxu0 0.0
        %423 = vmatpush1.msra.mxu0 0.0
        %424 = vmatprep.subr.mxu0 0.0
        %425 = vmatpush1.msra.mxu0 0.0
        %426 = vmatprep.subr.mxu0 0.0
        %427 = vmatpush1.msra.mxu0 0.0
        %428 = vmatprep.subr.mxu0 0.0
        %429 = vmatpush1.msra.mxu0 0.0
        %430 = vmatprep.subr.mxu0 0.0
        %431 = vmatpush1.msra.mxu0 0.0
        %432 = vmatprep.subr.mxu0 0.0
        %433 = vmatpush1.msra.mxu0 0.0
        %434 = vmatprep.subr.mxu0 0.0
        %435 = vmatpush1.msra.mxu0 0.0
        %436 = vmatprep.subr.mxu0 0.0
        %437 = vmatpush1.msra.mxu0 0.0
        %438 = vmatprep.subr.mxu0 0.0
        %439 = vmatpush1.msra.mxu0 0.0
        %440 = vmatprep.subr.mxu0 0.0
        %441 = vmatpush1.msra.mxu0 0.0
        %442 = vmatprep.subr.mxu0 0.0
        %443 = vmatpush1.msra.mxu0 0.0
        %444 = vmatprep.subr.mxu0 0.0
        %445 = vmatpush1.msra.mxu0 0.0
        %446 = vmatprep.subr.mxu0 0.0
        %447 = vmatpush1.msra.mxu0 0.0
        %448 = vmatprep.mubr.f32.mxu0 0.0
        %449 = vmatmul.mubr.f32.gmra.mrb[0].mxu0 %v382
        %v450 = vpop.f32.mrb[0].mxu0
        %v451 = vadd.f32 %v374, %v450
        %v452 = vpop.f32.mrb[0].mxu0
        %453 = vdwg.mxu0
        %v455 = vsel %vm381, %v366, 0
        %457 = vmatprep.subr.mxu0 0.0
        %458 = vmatpush1.msra.mxu0 %v361
        %459 = vmatprep.subr.mxu0 0.0
        %460 = vmatpush1.msra.mxu0 %v362
        %461 = vmatprep.subr.mxu0 0.0
        %462 = vmatpush1.msra.mxu0 %v363
        %463 = vmatprep.subr.mxu0 0.0
        %464 = vmatpush1.msra.mxu0 %v364
        %465 = vmatprep.subr.mxu0 0.0
        %466 = vmatpush1.msra.mxu0 0.0
        %467 = vmatprep.subr.mxu0 0.0
        %468 = vmatpush1.msra.mxu0 0.0
        %469 = vmatprep.subr.mxu0 0.0
        %470 = vmatpush1.msra.mxu0 0.0
        %471 = vmatprep.subr.mxu0 0.0
        %472 = vmatpush1.msra.mxu0 0.0
        %473 = vmatprep.subr.mxu0 0.0
        %474 = vmatpush1.msra.mxu0 0.0
        %475 = vmatprep.subr.mxu0 0.0
        %476 = vmatpush1.msra.mxu0 0.0
        %477 = vmatprep.subr.mxu0 0.0
        %478 = vmatpush1.msra.mxu0 0.0
        %479 = vmatprep.subr.mxu0 0.0
        %480 = vmatpush1.msra.mxu0 0.0
        %481 = vmatprep.subr.mxu0 0.0
        %482 = vmatpush1.msra.mxu0 0.0
        %483 = vmatprep.subr.mxu0 0.0
        %484 = vmatpush1.msra.mxu0 0.0
        %485 = vmatprep.subr.mxu0 0.0
        %486 = vmatpush1.msra.mxu0 0.0
        %487 = vmatprep.subr.mxu0 0.0
        %488 = vmatpush1.msra.mxu0 0.0
        %489 = vmatprep.subr.mxu0 0.0
        %490 = vmatpush1.msra.mxu0 0.0
        %491 = vmatprep.subr.mxu0 0.0
        %492 = vmatpush1.msra.mxu0 0.0
        %493 = vmatprep.subr.mxu0 0.0
        %494 = vmatpush1.msra.mxu0 0.0
        %495 = vmatprep.subr.mxu0 0.0
        %496 = vmatpush1.msra.mxu0 0.0
        %497 = vmatprep.subr.mxu0 0.0
        %498 = vmatpush1.msra.mxu0 0.0
        %499 = vmatprep.subr.mxu0 0.0
        %500 = vmatpush1.msra.mxu0 0.0
        %501 = vmatprep.subr.mxu0 0.0
        %502 = vmatpush1.msra.mxu0 0.0
        %503 = vmatprep.subr.mxu0 0.0
        %504 = vmatpush1.msra.mxu0 0.0
        %505 = vmatprep.subr.mxu0 0.0
        %506 = vmatpush1.msra.mxu0 0.0
        %507 = vmatprep.subr.mxu0 0.0
        %508 = vmatpush1.msra.mxu0 0.0
        %509 = vmatprep.subr.mxu0 0.0
        %510 = vmatpush1.msra.mxu0 0.0
        %511 = vmatprep.subr.mxu0 0.0
        %512 = vmatpush1.msra.mxu0 0.0
        %513 = vmatprep.subr.mxu0 0.0
        %514 = vmatpush1.msra.mxu0 0.0
        %515 = vmatprep.subr.mxu0 0.0
        %516 = vmatpush1.msra.mxu0 0.0
        %517 = vmatprep.subr.mxu0 0.0
        %518 = vmatpush1.msra.mxu0 0.0
        %519 = vmatprep.subr.mxu0 0.0
        %520 = vmatpush1.msra.mxu0 0.0
        %521 = vmatprep.mubr.f32.mxu0 0.0
        %522 = vmatmul.mubr.f32.gmra.mrb[0].mxu0 %v455
        %v523 = vpop.f32.mrb[0].mxu0
        %v524 = vadd.f32 0.0, %v523
        %v525 = vpop.f32.mrb[0].mxu0
        %526 = vdwg.mxu0
        %v527 = vadd.f32 %v451, %v524
        %v528 = vxor.u32 %v527, 2147483648
        %v529 = vmul.f32 %v528, 1.442695
        %v530 = vpow.pop %v529
        %v531 = vadd.f32 %v530, 1.0
        %v532 = vrcp.pop %v531
        %v533 = vmul.f32 1.0, %v532
        %v534 = vtanh.pop %v527
        %536 = vrot.lane.b32.xlu0 %v367, 32
        %v537 = vpop.permute.xlu0 %536
        %v539 = vmul.f32 %v533, %v537
        %541 = vrot.lane.b32.xlu0 %v534, 32
        %v542 = vpop.permute.xlu0 %541
        %v544 = vmul.f32 %v533, %v542
        %546 = vrot.lane.b32.xlu0 %v544, 32
        %v547 = vpop.permute.xlu0 %546
        %v549 = vadd.f32 %v539, %v547
        %v550 = vtanh.pop %v549
        %552 = vrot.lane.b32.xlu0 %v550, 32
        %v553 = vpop.permute.xlu0 %552
        %v555 = vmul.f32 %v533, %v553
        %v558 = vunpack.c.l.s4 1966171168
        %v559 = vunpack.c.0.s8 %v558
        %v560 = vlaneseq
        %v561 = vshrl.u32 %v560, 7
        %v562 = vsub.s32 %v559, %v561
        %v563 = vrot.slane %v555, %v562
        %v564 = vcombine.high %v563, %v563
        %v566 = vunpack.c.l.s4 1966171168
        %v567 = vunpack.c.0.s8 %v566
        %v568 = vlaneseq
        %v569 = vshrl.u32 %v568, 7
        %v570 = vsub.s32 %v567, %v569
        %v571 = vrot.slane %v563, %v570
        %v573 = vunpack.c.l.s4 1966171168
        %v574 = vunpack.c.0.s8 %v573
        %v575 = vlaneseq
        %v576 = vshrl.u32 %v575, 7
        %v577 = vsub.s32 %v574, %v576
        %v578 = vrot.slane %v564, %v577
        %v579 = vlaneseq
        %v580 = vshrl.u32 %v579, 7
        %v581 = vsub.s32 0, %v580
        %v582 = vrot.slane %v571, %v581
        %v583 = vlaneseq
        %v584 = vshrl.u32 %v583, 7
        %v585 = vsub.s32 0, %v584
        %v586 = vrot.slane %v578, %v585
        %587 = vrot.lane.b32.xlu0 %v582, 64
        %v588 = vpop.permute.xlu0 %587
        %589 = vrot.lane.b32.xlu0 %v586, 64
        %v590 = vpop.permute.xlu0 %589
        %vm593 = vcmask 253952
        %594 = vst.msk [vmem:[%s343] sm:$0x1] %vm593, %v588
        %595 = vst.msk [vmem:[%s343 + $0x8] sm:$0x1] %vm593, %v590
        %v596 = vld [vmem:[%s307 + $0x1] sm:$0x1]
        %v597 = vld [vmem:[%s307 + $0x9] sm:$0x1]
        %v600 = vrot.slane %v597, 7
        %v601 = vsel %vm379, %v600, %v596
        %v602 = vsel %vm381, %v601, 0
        %604 = vmatprep.subr.mxu0 0.0
        %605 = vmatpush1.msra.mxu0 %v357
        %606 = vmatprep.subr.mxu0 0.0
        %607 = vmatpush1.msra.mxu0 %v358
        %608 = vmatprep.subr.mxu0 0.0
        %609 = vmatpush1.msra.mxu0 %v359
        %610 = vmatprep.subr.mxu0 0.0
        %611 = vmatpush1.msra.mxu0 %v360
        %612 = vmatprep.subr.mxu0 0.0
        %613 = vmatpush1.msra.mxu0 0.0
        %614 = vmatprep.subr.mxu0 0.0
        %615 = vmatpush1.msra.mxu0 0.0
        %616 = vmatprep.subr.mxu0 0.0
        %617 = vmatpush1.msra.mxu0 0.0
        %618 = vmatprep.subr.mxu0 0.0
        %619 = vmatpush1.msra.mxu0 0.0
        %620 = vmatprep.subr.mxu0 0.0
        %621 = vmatpush1.msra.mxu0 0.0
        %622 = vmatprep.subr.mxu0 0.0
        %623 = vmatpush1.msra.mxu0 0.0
        %624 = vmatprep.subr.mxu0 0.0
        %625 = vmatpush1.msra.mxu0 0.0
        %626 = vmatprep.subr.mxu0 0.0
        %627 = vmatpush1.msra.mxu0 0.0
        %628 = vmatprep.subr.mxu0 0.0
        %629 = vmatpush1.msra.mxu0 0.0
        %630 = vmatprep.subr.mxu0 0.0
        %631 = vmatpush1.msra.mxu0 0.0
        %632 = vmatprep.subr.mxu0 0.0
        %633 = vmatpush1.msra.mxu0 0.0
        %634 = vmatprep.subr.mxu0 0.0
        %635 = vmatpush1.msra.mxu0 0.0
        %636 = vmatprep.subr.mxu0 0.0
        %637 = vmatpush1.msra.mxu0 0.0
        %638 = vmatprep.subr.mxu0 0.0
        %639 = vmatpush1.msra.mxu0 0.0
        %640 = vmatprep.subr.mxu0 0.0
        %641 = vmatpush1.msra.mxu0 0.0
        %642 = vmatprep.subr.mxu0 0.0
        %643 = vmatpush1.msra.mxu0 0.0
        %644 = vmatprep.subr.mxu0 0.0
        %645 = vmatpush1.msra.mxu0 0.0
        %646 = vmatprep.subr.mxu0 0.0
        %647 = vmatpush1.msra.mxu0 0.0
        %648 = vmatprep.subr.mxu0 0.0
        %649 = vmatpush1.msra.mxu0 0.0
        %650 = vmatprep.subr.mxu0 0.0
        %651 = vmatpush1.msra.mxu0 0.0
        %652 = vmatprep.subr.mxu0 0.0
        %653 = vmatpush1.msra.mxu0 0.0
        %654 = vmatprep.subr.mxu0 0.0
        %655 = vmatpush1.msra.mxu0 0.0
        %656 = vmatprep.subr.mxu0 0.0
        %657 = vmatpush1.msra.mxu0 0.0
        %658 = vmatprep.subr.mxu0 0.0
        %659 = vmatpush1.msra.mxu0 0.0
        %660 = vmatprep.subr.mxu0 0.0
        %661 = vmatpush1.msra.mxu0 0.0
        %662 = vmatprep.subr.mxu0 0.0
        %663 = vmatpush1.msra.mxu0 0.0
        %664 = vmatprep.subr.mxu0 0.0
        %665 = vmatpush1.msra.mxu0 0.0
        %666 = vmatprep.subr.mxu0 0.0
        %667 = vmatpush1.msra.mxu0 0.0
        %668 = vmatprep.mubr.f32.mxu0 0.0
        %669 = vmatmul.mubr.f32.gmra.mrb[0].mxu0 %v602
        %v670 = vpop.f32.mrb[0].mxu0
        %v671 = vadd.f32 %v374, %v670
        %v672 = vpop.f32.mrb[0].mxu0
        %673 = vdwg.mxu0
        %674 = vrot.lane.b32.xlu0 %v555, 64
        %v675 = vpop.permute.xlu0 %674
        %v676 = vsel %vm381, %v675, 0
        %678 = vmatprep.subr.mxu0 0.0
        %679 = vmatpush1.msra.mxu0 %v361
        %680 = vmatprep.subr.mxu0 0.0
        %681 = vmatpush1.msra.mxu0 %v362
        %682 = vmatprep.subr.mxu0 0.0
        %683 = vmatpush1.msra.mxu0 %v363
        %684 = vmatprep.subr.mxu0 0.0
        %685 = vmatpush1.msra.mxu0 %v364
        %686 = vmatprep.subr.mxu0 0.0
        %687 = vmatpush1.msra.mxu0 0.0
        %688 = vmatprep.subr.mxu0 0.0
        %689 = vmatpush1.msra.mxu0 0.0
        %690 = vmatprep.subr.mxu0 0.0
        %691 = vmatpush1.msra.mxu0 0.0
        %692 = vmatprep.subr.mxu0 0.0
        %693 = vmatpush1.msra.mxu0 0.0
        %694 = vmatprep.subr.mxu0 0.0
        %695 = vmatpush1.msra.mxu0 0.0
        %696 = vmatprep.subr.mxu0 0.0
        %697 = vmatpush1.msra.mxu0 0.0
        %698 = vmatprep.subr.mxu0 0.0
        %699 = vmatpush1.msra.mxu0 0.0
        %700 = vmatprep.subr.mxu0 0.0
        %701 = vmatpush1.msra.mxu0 0.0
        %702 = vmatprep.subr.mxu0 0.0
        %703 = vmatpush1.msra.mxu0 0.0
        %704 = vmatprep.subr.mxu0 0.0
        %705 = vmatpush1.msra.mxu0 0.0
        %706 = vmatprep.subr.mxu0 0.0
        %707 = vmatpush1.msra.mxu0 0.0
        %708 = vmatprep.subr.mxu0 0.0
        %709 = vmatpush1.msra.mxu0 0.0
        %710 = vmatprep.subr.mxu0 0.0
        %711 = vmatpush1.msra.mxu0 0.0
        %712 = vmatprep.subr.mxu0 0.0
        %713 = vmatpush1.msra.mxu0 0.0
        %714 = vmatprep.subr.mxu0 0.0
        %715 = vmatpush1.msra.mxu0 0.0
        %716 = vmatprep.subr.mxu0 0.0
        %717 = vmatpush1.msra.mxu0 0.0
        %718 = vmatprep.subr.mxu0 0.0
        %719 = vmatpush1.msra.mxu0 0.0
        %720 = vmatprep.subr.mxu0 0.0
        %721 = vmatpush1.msra.mxu0 0.0
        %722 = vmatprep.subr.mxu0 0.0
        %723 = vmatpush1.msra.mxu0 0.0
        %724 = vmatprep.subr.mxu0 0.0
        %725 = vmatpush1.msra.mxu0 0.0
        %726 = vmatprep.subr.mxu0 0.0
        %727 = vmatpush1.msra.mxu0 0.0
        %728 = vmatprep.subr.mxu0 0.0
        %729 = vmatpush1.msra.mxu0 0.0
        %730 = vmatprep.subr.mxu0 0.0
        %731 = vmatpush1.msra.mxu0 0.0
        %732 = vmatprep.subr.mxu0 0.0
        %733 = vmatpush1.msra.mxu0 0.0
        %734 = vmatprep.subr.mxu0 0.0
        %735 = vmatpush1.msra.mxu0 0.0
        %736 = vmatprep.subr.mxu0 0.0
        %737 = vmatpush1.msra.mxu0 0.0
        %738 = vmatprep.subr.mxu0 0.0
        %739 = vmatpush1.msra.mxu0 0.0
        %740 = vmatprep.subr.mxu0 0.0
        %741 = vmatpush1.msra.mxu0 0.0
        %742 = vmatprep.mubr.f32.mxu0 0.0
        %743 = vmatmul.mubr.f32.gmra.mrb[0].mxu0 %v676
        %v744 = vpop.f32.mrb[0].mxu0
        %v745 = vadd.f32 0.0, %v744
        %v746 = vpop.f32.mrb[0].mxu0
        %747 = vdwg.mxu0
        %v748 = vadd.f32 %v671, %v745
        %v749 = vxor.u32 %v748, 2147483648
        %v750 = vmul.f32 %v749, 1.442695
        %v751 = vpow.pop %v750
        %v752 = vadd.f32 %v751, 1.0
        %v753 = vrcp.pop %v752
        %v754 = vmul.f32 1.0, %v753
        %v755 = vtanh.pop %v748
        %v756 = vmul.f32 %v754, %v549
        %758 = vrot.lane.b32.xlu0 %v755, 32
        %v759 = vpop.permute.xlu0 %758
        %v761 = vmul.f32 %v754, %v759
        %763 = vrot.lane.b32.xlu0 %v761, 32
        %v764 = vpop.permute.xlu0 %763
        %v766 = vadd.f32 %v756, %v764
        %v767 = vtanh.pop %v766
        %769 = vrot.lane.b32.xlu0 %v767, 32
        %v770 = vpop.permute.xlu0 %769
        %v772 = vmul.f32 %v754, %v770
        %v775 = vunpack.c.l.s4 1966171168
        %v776 = vunpack.c.0.s8 %v775
        %v777 = vlaneseq
        %v778 = vshrl.u32 %v777, 7
        %v779 = vsub.s32 %v776, %v778
        %v780 = vrot.slane %v772, %v779
        %v781 = vcombine.high %v780, %v780
        %v783 = vunpack.c.l.s4 1966171168
        %v784 = vunpack.c.0.s8 %v783
        %v785 = vlaneseq
        %v786 = vshrl.u32 %v785, 7
        %v787 = vsub.s32 %v784, %v786
        %v788 = vrot.slane %v780, %v787
        %v790 = vunpack.c.l.s4 1966171168
        %v791 = vunpack.c.0.s8 %v790
        %v792 = vlaneseq
        %v793 = vshrl.u32 %v792, 7
        %v794 = vsub.s32 %v791, %v793
        %v795 = vrot.slane %v781, %v794
        %v796 = vlaneseq
        %v797 = vshrl.u32 %v796, 7
        %v798 = vsub.s32 0, %v797
        %v799 = vrot.slane %v788, %v798
        %v800 = vlaneseq
        %v801 = vshrl.u32 %v800, 7
        %v802 = vsub.s32 0, %v801
        %v803 = vrot.slane %v795, %v802
        %804 = vrot.lane.b32.xlu0 %v799, 64
        %v805 = vpop.permute.xlu0 %804
        %806 = vrot.lane.b32.xlu0 %v803, 64
        %v807 = vpop.permute.xlu0 %806
        %810 = vst.msk [vmem:[%s343 + $0x1] sm:$0x1] %vm593, %v805
        %811 = vst.msk [vmem:[%s343 + $0x9] sm:$0x1] %vm593, %v807
        %v812 = vld [vmem:[%s307 + $0x2] sm:$0x1]
        %v813 = vld [vmem:[%s307 + $0xa] sm:$0x1]
        %v816 = vrot.slane %v813, 7
        %v817 = vsel %vm379, %v816, %v812
        %v818 = vsel %vm381, %v817, 0
        %820 = vmatprep.subr.mxu0 0.0
        %821 = vmatpush1.msra.mxu0 %v357
        %822 = vmatprep.subr.mxu0 0.0
        %823 = vmatpush1.msra.mxu0 %v358
        %824 = vmatprep.subr.mxu0 0.0
        %825 = vmatpush1.msra.mxu0 %v359
        %826 = vmatprep.subr.mxu0 0.0
        %827 = vmatpush1.msra.mxu0 %v360
        %828 = vmatprep.subr.mxu0 0.0
        %829 = vmatpush1.msra.mxu0 0.0
        %830 = vmatprep.subr.mxu0 0.0
        %831 = vmatpush1.msra.mxu0 0.0
        %832 = vmatprep.subr.mxu0 0.0
        %833 = vmatpush1.msra.mxu0 0.0
        %834 = vmatprep.subr.mxu0 0.0
        %835 = vmatpush1.msra.mxu0 0.0
        %836 = vmatprep.subr.mxu0 0.0
        %837 = vmatpush1.msra.mxu0 0.0
        %838 = vmatprep.subr.mxu0 0.0
        %839 = vmatpush1.msra.mxu0 0.0
        %840 = vmatprep.subr.mxu0 0.0
        %841 = vmatpush1.msra.mxu0 0.0
        %842 = vmatprep.subr.mxu0 0.0
        %843 = vmatpush1.msra.mxu0 0.0
        %844 = vmatprep.subr.mxu0 0.0
        %845 = vmatpush1.msra.mxu0 0.0
        %846 = vmatprep.subr.mxu0 0.0
        %847 = vmatpush1.msra.mxu0 0.0
        %848 = vmatprep.subr.mxu0 0.0
        %849 = vmatpush1.msra.mxu0 0.0
        %850 = vmatprep.subr.mxu0 0.0
        %851 = vmatpush1.msra.mxu0 0.0
        %852 = vmatprep.subr.mxu0 0.0
        %853 = vmatpush1.msra.mxu0 0.0
        %854 = vmatprep.subr.mxu0 0.0
        %855 = vmatpush1.msra.mxu0 0.0
        %856 = vmatprep.subr.mxu0 0.0
        %857 = vmatpush1.msra.mxu0 0.0
        %858 = vmatprep.subr.mxu0 0.0
        %859 = vmatpush1.msra.mxu0 0.0
        %860 = vmatprep.subr.mxu0 0.0
        %861 = vmatpush1.msra.mxu0 0.0
        %862 = vmatprep.subr.mxu0 0.0
        %863 = vmatpush1.msra.mxu0 0.0
        %864 = vmatprep.subr.mxu0 0.0
        %865 = vmatpush1.msra.mxu0 0.0
        %866 = vmatprep.subr.mxu0 0.0
        %867 = vmatpush1.msra.mxu0 0.0
        %868 = vmatprep.subr.mxu0 0.0
        %869 = vmatpush1.msra.mxu0 0.0
        %870 = vmatprep.subr.mxu0 0.0
        %871 = vmatpush1.msra.mxu0 0.0
        %872 = vmatprep.subr.mxu0 0.0
        %873 = vmatpush1.msra.mxu0 0.0
        %874 = vmatprep.subr.mxu0 0.0
        %875 = vmatpush1.msra.mxu0 0.0
        %876 = vmatprep.subr.mxu0 0.0
        %877 = vmatpush1.msra.mxu0 0.0
        %878 = vmatprep.subr.mxu0 0.0
        %879 = vmatpush1.msra.mxu0 0.0
        %880 = vmatprep.subr.mxu0 0.0
        %881 = vmatpush1.msra.mxu0 0.0
        %882 = vmatprep.subr.mxu0 0.0
        %883 = vmatpush1.msra.mxu0 0.0
        %884 = vmatprep.mubr.f32.mxu0 0.0
        %885 = vmatmul.mubr.f32.gmra.mrb[0].mxu0 %v818
        %v886 = vpop.f32.mrb[0].mxu0
        %v887 = vadd.f32 %v374, %v886
        %v888 = vpop.f32.mrb[0].mxu0
        %889 = vdwg.mxu0
        %890 = vrot.lane.b32.xlu0 %v772, 64
        %v891 = vpop.permute.xlu0 %890
        %v892 = vsel %vm381, %v891, 0
        %894 = vmatprep.subr.mxu0 0.0
        %895 = vmatpush1.msra.mxu0 %v361
        %896 = vmatprep.subr.mxu0 0.0
        %897 = vmatpush1.msra.mxu0 %v362
        %898 = vmatprep.subr.mxu0 0.0
        %899 = vmatpush1.msra.mxu0 %v363
        %900 = vmatprep.subr.mxu0 0.0
        %901 = vmatpush1.msra.mxu0 %v364
        %902 = vmatprep.subr.mxu0 0.0
        %903 = vmatpush1.msra.mxu0 0.0
        %904 = vmatprep.subr.mxu0 0.0
        %905 = vmatpush1.msra.mxu0 0.0
        %906 = vmatprep.subr.mxu0 0.0
        %907 = vmatpush1.msra.mxu0 0.0
        %908 = vmatprep.subr.mxu0 0.0
        %909 = vmatpush1.msra.mxu0 0.0
        %910 = vmatprep.subr.mxu0 0.0
        %911 = vmatpush1.msra.mxu0 0.0
        %912 = vmatprep.subr.mxu0 0.0
        %913 = vmatpush1.msra.mxu0 0.0
        %914 = vmatprep.subr.mxu0 0.0
        %915 = vmatpush1.msra.mxu0 0.0
        %916 = vmatprep.subr.mxu0 0.0
        %917 = vmatpush1.msra.mxu0 0.0
        %918 = vmatprep.subr.mxu0 0.0
        %919 = vmatpush1.msra.mxu0 0.0
        %920 = vmatprep.subr.mxu0 0.0
        %921 = vmatpush1.msra.mxu0 0.0
        %922 = vmatprep.subr.mxu0 0.0
        %923 = vmatpush1.msra.mxu0 0.0
        %924 = vmatprep.subr.mxu0 0.0
        %925 = vmatpush1.msra.mxu0 0.0
        %926 = vmatprep.subr.mxu0 0.0
        %927 = vmatpush1.msra.mxu0 0.0
        %928 = vmatprep.subr.mxu0 0.0
        %929 = vmatpush1.msra.mxu0 0.0
        %930 = vmatprep.subr.mxu0 0.0
        %931 = vmatpush1.msra.mxu0 0.0
        %932 = vmatprep.subr.mxu0 0.0
        %933 = vmatpush1.msra.mxu0 0.0
        %934 = vmatprep.subr.mxu0 0.0
        %935 = vmatpush1.msra.mxu0 0.0
        %936 = vmatprep.subr.mxu0 0.0
        %937 = vmatpush1.msra.mxu0 0.0
        %938 = vmatprep.subr.mxu0 0.0
        %939 = vmatpush1.msra.mxu0 0.0
        %940 = vmatprep.subr.mxu0 0.0
        %941 = vmatpush1.msra.mxu0 0.0
        %942 = vmatprep.subr.mxu0 0.0
        %943 = vmatpush1.msra.mxu0 0.0
        %944 = vmatprep.subr.mxu0 0.0
        %945 = vmatpush1.msra.mxu0 0.0
        %946 = vmatprep.subr.mxu0 0.0
        %947 = vmatpush1.msra.mxu0 0.0
        %948 = vmatprep.subr.mxu0 0.0
        %949 = vmatpush1.msra.mxu0 0.0
        %950 = vmatprep.subr.mxu0 0.0
        %951 = vmatpush1.msra.mxu0 0.0
        %952 = vmatprep.subr.mxu0 0.0
        %953 = vmatpush1.msra.mxu0 0.0
        %954 = vmatprep.subr.mxu0 0.0
        %955 = vmatpush1.msra.mxu0 0.0
        %956 = vmatprep.subr.mxu0 0.0
        %957 = vmatpush1.msra.mxu0 0.0
        %958 = vmatprep.mubr.f32.mxu0 0.0
        %959 = vmatmul.mubr.f32.gmra.mrb[0].mxu0 %v892
        %v960 = vpop.f32.mrb[0].mxu0
        %v961 = vadd.f32 0.0, %v960
        %v962 = vpop.f32.mrb[0].mxu0
        %963 = vdwg.mxu0
        %v964 = vadd.f32 %v887, %v961
        %v965 = vxor.u32 %v964, 2147483648
        %v966 = vmul.f32 %v965, 1.442695
        %v967 = vpow.pop %v966
        %v968 = vadd.f32 %v967, 1.0
        %v969 = vrcp.pop %v968
        %v970 = vmul.f32 1.0, %v969
        %v971 = vtanh.pop %v964
        %v972 = vmul.f32 %v970, %v766
        %974 = vrot.lane.b32.xlu0 %v971, 32
        %v975 = vpop.permute.xlu0 %974
        %v977 = vmul.f32 %v970, %v975
        %979 = vrot.lane.b32.xlu0 %v977, 32
        %v980 = vpop.permute.xlu0 %979
        %v982 = vadd.f32 %v972, %v980
        %v983 = vtanh.pop %v982
        %985 = vrot.lane.b32.xlu0 %v983, 32
        %v986 = vpop.permute.xlu0 %985
        %v988 = vmul.f32 %v970, %v986
        %v991 = vunpack.c.l.s4 1966171168
        %v992 = vunpack.c.0.s8 %v991
        %v993 = vlaneseq
        %v994 = vshrl.u32 %v993, 7
        %v995 = vsub.s32 %v992, %v994
        %v996 = vrot.slane %v988, %v995
        %v997 = vcombine.high %v996, %v996
        %v999 = vunpack.c.l.s4 1966171168
        %v1000 = vunpack.c.0.s8 %v999
        %v1001 = vlaneseq
        %v1002 = vshrl.u32 %v1001, 7
        %v1003 = vsub.s32 %v1000, %v1002
        %v1004 = vrot.slane %v996, %v1003
        %v1006 = vunpack.c.l.s4 1966171168
        %v1007 = vunpack.c.0.s8 %v1006
        %v1008 = vlaneseq
        %v1009 = vshrl.u32 %v1008, 7
        %v1010 = vsub.s32 %v1007, %v1009
        %v1011 = vrot.slane %v997, %v1010
        %v1012 = vlaneseq
        %v1013 = vshrl.u32 %v1012, 7
        %v1014 = vsub.s32 0, %v1013
        %v1015 = vrot.slane %v1004, %v1014
        %v1016 = vlaneseq
        %v1017 = vshrl.u32 %v1016, 7
        %v1018 = vsub.s32 0, %v1017
        %v1019 = vrot.slane %v1011, %v1018
        %1020 = vrot.lane.b32.xlu0 %v1015, 64
        %v1021 = vpop.permute.xlu0 %1020
        %1022 = vrot.lane.b32.xlu0 %v1019, 64
        %v1023 = vpop.permute.xlu0 %1022
        %1026 = vst.msk [vmem:[%s343 + $0x2] sm:$0x1] %vm593, %v1021
        %1027 = vst.msk [vmem:[%s343 + $0xa] sm:$0x1] %vm593, %v1023
        %v1028 = vld [vmem:[%s307 + $0x3] sm:$0x1]
        %v1029 = vld [vmem:[%s307 + $0xb] sm:$0x1]
        %v1032 = vrot.slane %v1029, 7
        %v1033 = vsel %vm379, %v1032, %v1028
        %v1034 = vsel %vm381, %v1033, 0
        %1036 = vmatprep.subr.mxu0 0.0
        %1037 = vmatpush1.msra.mxu0 %v357
        %1038 = vmatprep.subr.mxu0 0.0
        %1039 = vmatpush1.msra.mxu0 %v358
        %1040 = vmatprep.subr.mxu0 0.0
        %1041 = vmatpush1.msra.mxu0 %v359
        %1042 = vmatprep.subr.mxu0 0.0
        %1043 = vmatpush1.msra.mxu0 %v360
        %1044 = vmatprep.subr.mxu0 0.0
        %1045 = vmatpush1.msra.mxu0 0.0
        %1046 = vmatprep.subr.mxu0 0.0
        %1047 = vmatpush1.msra.mxu0 0.0
        %1048 = vmatprep.subr.mxu0 0.0
        %1049 = vmatpush1.msra.mxu0 0.0
        %1050 = vmatprep.subr.mxu0 0.0
        %1051 = vmatpush1.msra.mxu0 0.0
        %1052 = vmatprep.subr.mxu0 0.0
        %1053 = vmatpush1.msra.mxu0 0.0
        %1054 = vmatprep.subr.mxu0 0.0
        %1055 = vmatpush1.msra.mxu0 0.0
        %1056 = vmatprep.subr.mxu0 0.0
        %1057 = vmatpush1.msra.mxu0 0.0
        %1058 = vmatprep.subr.mxu0 0.0
        %1059 = vmatpush1.msra.mxu0 0.0
        %1060 = vmatprep.subr.mxu0 0.0
        %1061 = vmatpush1.msra.mxu0 0.0
        %1062 = vmatprep.subr.mxu0 0.0
        %1063 = vmatpush1.msra.mxu0 0.0
        %1064 = vmatprep.subr.mxu0 0.0
        %1065 = vmatpush1.msra.mxu0 0.0
        %1066 = vmatprep.subr.mxu0 0.0
        %1067 = vmatpush1.msra.mxu0 0.0
        %1068 = vmatprep.subr.mxu0 0.0
        %1069 = vmatpush1.msra.mxu0 0.0
        %1070 = vmatprep.subr.mxu0 0.0
        %1071 = vmatpush1.msra.mxu0 0.0
        %1072 = vmatprep.subr.mxu0 0.0
        %1073 = vmatpush1.msra.mxu0 0.0
        %1074 = vmatprep.subr.mxu0 0.0
        %1075 = vmatpush1.msra.mxu0 0.0
        %1076 = vmatprep.subr.mxu0 0.0
        %1077 = vmatpush1.msra.mxu0 0.0
        %1078 = vmatprep.subr.mxu0 0.0
        %1079 = vmatpush1.msra.mxu0 0.0
        %1080 = vmatprep.subr.mxu0 0.0
        %1081 = vmatpush1.msra.mxu0 0.0
        %1082 = vmatprep.subr.mxu0 0.0
        %1083 = vmatpush1.msra.mxu0 0.0
        %1084 = vmatprep.subr.mxu0 0.0
        %1085 = vmatpush1.msra.mxu0 0.0
        %1086 = vmatprep.subr.mxu0 0.0
        %1087 = vmatpush1.msra.mxu0 0.0
        %1088 = vmatprep.subr.mxu0 0.0
        %1089 = vmatpush1.msra.mxu0 0.0
        %1090 = vmatprep.subr.mxu0 0.0
        %1091 = vmatpush1.msra.mxu0 0.0
        %1092 = vmatprep.subr.mxu0 0.0
        %1093 = vmatpush1.msra.mxu0 0.0
        %1094 = vmatprep.subr.mxu0 0.0
        %1095 = vmatpush1.msra.mxu0 0.0
        %1096 = vmatprep.subr.mxu0 0.0
        %1097 = vmatpush1.msra.mxu0 0.0
        %1098 = vmatprep.subr.mxu0 0.0
        %1099 = vmatpush1.msra.mxu0 0.0
        %1100 = vmatprep.mubr.f32.mxu0 0.0
        %1101 = vmatmul.mubr.f32.gmra.mrb[0].mxu0 %v1034
        %v1102 = vpop.f32.mrb[0].mxu0
        %v1103 = vadd.f32 %v374, %v1102
        %v1104 = vpop.f32.mrb[0].mxu0
        %1105 = vdwg.mxu0
        %1106 = vrot.lane.b32.xlu0 %v988, 64
        %v1107 = vpop.permute.xlu0 %1106
        %v1108 = vsel %vm381, %v1107, 0
        %1110 = vmatprep.subr.mxu0 0.0
        %1111 = vmatpush1.msra.mxu0 %v361
        %1112 = vmatprep.subr.mxu0 0.0
        %1113 = vmatpush1.msra.mxu0 %v362
        %1114 = vmatprep.subr.mxu0 0.0
        %1115 = vmatpush1.msra.mxu0 %v363
        %1116 = vmatprep.subr.mxu0 0.0
        %1117 = vmatpush1.msra.mxu0 %v364
        %1118 = vmatprep.subr.mxu0 0.0
        %1119 = vmatpush1.msra.mxu0 0.0
        %1120 = vmatprep.subr.mxu0 0.0
        %1121 = vmatpush1.msra.mxu0 0.0
        %1122 = vmatprep.subr.mxu0 0.0
        %1123 = vmatpush1.msra.mxu0 0.0
        %1124 = vmatprep.subr.mxu0 0.0
        %1125 = vmatpush1.msra.mxu0 0.0
        %1126 = vmatprep.subr.mxu0 0.0
        %1127 = vmatpush1.msra.mxu0 0.0
        %1128 = vmatprep.subr.mxu0 0.0
        %1129 = vmatpush1.msra.mxu0 0.0
        %1130 = vmatprep.subr.mxu0 0.0
        %1131 = vmatpush1.msra.mxu0 0.0
        %1132 = vmatprep.subr.mxu0 0.0
        %1133 = vmatpush1.msra.mxu0 0.0
        %1134 = vmatprep.subr.mxu0 0.0
        %1135 = vmatpush1.msra.mxu0 0.0
        %1136 = vmatprep.subr.mxu0 0.0
        %1137 = vmatpush1.msra.mxu0 0.0
        %1138 = vmatprep.subr.mxu0 0.0
        %1139 = vmatpush1.msra.mxu0 0.0
        %1140 = vmatprep.subr.mxu0 0.0
        %1141 = vmatpush1.msra.mxu0 0.0
        %1142 = vmatprep.subr.mxu0 0.0
        %1143 = vmatpush1.msra.mxu0 0.0
        %1144 = vmatprep.subr.mxu0 0.0
        %1145 = vmatpush1.msra.mxu0 0.0
        %1146 = vmatprep.subr.mxu0 0.0
        %1147 = vmatpush1.msra.mxu0 0.0
        %1148 = vmatprep.subr.mxu0 0.0
        %1149 = vmatpush1.msra.mxu0 0.0
        %1150 = vmatprep.subr.mxu0 0.0
        %1151 = vmatpush1.msra.mxu0 0.0
        %1152 = vmatprep.subr.mxu0 0.0
        %1153 = vmatpush1.msra.mxu0 0.0
        %1154 = vmatprep.subr.mxu0 0.0
        %1155 = vmatpush1.msra.mxu0 0.0
        %1156 = vmatprep.subr.mxu0 0.0
        %1157 = vmatpush1.msra.mxu0 0.0
        %1158 = vmatprep.subr.mxu0 0.0
        %1159 = vmatpush1.msra.mxu0 0.0
        %1160 = vmatprep.subr.mxu0 0.0
        %1161 = vmatpush1.msra.mxu0 0.0
        %1162 = vmatprep.subr.mxu0 0.0
        %1163 = vmatpush1.msra.mxu0 0.0
        %1164 = vmatprep.subr.mxu0 0.0
        %1165 = vmatpush1.msra.mxu0 0.0
        %1166 = vmatprep.subr.mxu0 0.0
        %1167 = vmatpush1.msra.mxu0 0.0
        %1168 = vmatprep.subr.mxu0 0.0
        %1169 = vmatpush1.msra.mxu0 0.0
        %1170 = vmatprep.subr.mxu0 0.0
        %1171 = vmatpush1.msra.mxu0 0.0
        %1172 = vmatprep.subr.mxu0 0.0
        %1173 = vmatpush1.msra.mxu0 0.0
        %1174 = vmatprep.mubr.f32.mxu0 0.0
        %1175 = vmatmul.mubr.f32.gmra.mrb[0].mxu0 %v1108
        %v1176 = vpop.f32.mrb[0].mxu0
        %v1177 = vadd.f32 0.0, %v1176
        %v1178 = vpop.f32.mrb[0].mxu0
        %1179 = vdwg.mxu0
        %v1180 = vadd.f32 %v1103, %v1177
        %v1181 = vxor.u32 %v1180, 2147483648
        %v1182 = vmul.f32 %v1181, 1.442695
        %v1183 = vpow.pop %v1182
        %v1184 = vadd.f32 %v1183, 1.0
        %v1185 = vrcp.pop %v1184
        %v1186 = vmul.f32 1.0, %v1185
        %v1187 = vtanh.pop %v1180
        %v1188 = vmul.f32 %v1186, %v982
        %1190 = vrot.lane.b32.xlu0 %v1187, 32
        %v1191 = vpop.permute.xlu0 %1190
        %v1193 = vmul.f32 %v1186, %v1191
        %1195 = vrot.lane.b32.xlu0 %v1193, 32
        %v1196 = vpop.permute.xlu0 %1195
        %v1198 = vadd.f32 %v1188, %v1196
        %v1199 = vtanh.pop %v1198
        %1201 = vrot.lane.b32.xlu0 %v1199, 32
        %v1202 = vpop.permute.xlu0 %1201
        %v1204 = vmul.f32 %v1186, %v1202
        %v1207 = vunpack.c.l.s4 1966171168
        %v1208 = vunpack.c.0.s8 %v1207
        %v1209 = vlaneseq
        %v1210 = vshrl.u32 %v1209, 7
        %v1211 = vsub.s32 %v1208, %v1210
        %v1212 = vrot.slane %v1204, %v1211
        %v1213 = vcombine.high %v1212, %v1212
        %v1215 = vunpack.c.l.s4 1966171168
        %v1216 = vunpack.c.0.s8 %v1215
        %v1217 = vlaneseq
        %v1218 = vshrl.u32 %v1217, 7
        %v1219 = vsub.s32 %v1216, %v1218
        %v1220 = vrot.slane %v1212, %v1219
        %v1222 = vunpack.c.l.s4 1966171168
        %v1223 = vunpack.c.0.s8 %v1222
        %v1224 = vlaneseq
        %v1225 = vshrl.u32 %v1224, 7
        %v1226 = vsub.s32 %v1223, %v1225
        %v1227 = vrot.slane %v1213, %v1226
        %v1228 = vlaneseq
        %v1229 = vshrl.u32 %v1228, 7
        %v1230 = vsub.s32 0, %v1229
        %v1231 = vrot.slane %v1220, %v1230
        %v1232 = vlaneseq
        %v1233 = vshrl.u32 %v1232, 7
        %v1234 = vsub.s32 0, %v1233
        %v1235 = vrot.slane %v1227, %v1234
        %1236 = vrot.lane.b32.xlu0 %v1231, 64
        %v1237 = vpop.permute.xlu0 %1236
        %1238 = vrot.lane.b32.xlu0 %v1235, 64
        %v1239 = vpop.permute.xlu0 %1238
        %1242 = vst.msk [vmem:[%s343 + $0x3] sm:$0x1] %vm593, %v1237
        %1243 = vst.msk [vmem:[%s343 + $0xb] sm:$0x1] %vm593, %v1239
        %v1244 = vld [vmem:[%s307 + $0x4] sm:$0x1]
        %v1245 = vld [vmem:[%s307 + $0xc] sm:$0x1]
        %v1248 = vrot.slane %v1245, 7
        %v1249 = vsel %vm379, %v1248, %v1244
        %v1250 = vsel %vm381, %v1249, 0
        %1252 = vmatprep.subr.mxu0 0.0
        %1253 = vmatpush1.msra.mxu0 %v357
        %1254 = vmatprep.subr.mxu0 0.0
        %1255 = vmatpush1.msra.mxu0 %v358
        %1256 = vmatprep.subr.mxu0 0.0
        %1257 = vmatpush1.msra.mxu0 %v359
        %1258 = vmatprep.subr.mxu0 0.0
        %1259 = vmatpush1.msra.mxu0 %v360
        %1260 = vmatprep.subr.mxu0 0.0
        %1261 = vmatpush1.msra.mxu0 0.0
        %1262 = vmatprep.subr.mxu0 0.0
        %1263 = vmatpush1.msra.mxu0 0.0
        %1264 = vmatprep.subr.mxu0 0.0
        %1265 = vmatpush1.msra.mxu0 0.0
        %1266 = vmatprep.subr.mxu0 0.0
        %1267 = vmatpush1.msra.mxu0 0.0
        %1268 = vmatprep.subr.mxu0 0.0
        %1269 = vmatpush1.msra.mxu0 0.0
        %1270 = vmatprep.subr.mxu0 0.0
        %1271 = vmatpush1.msra.mxu0 0.0
        %1272 = vmatprep.subr.mxu0 0.0
        %1273 = vmatpush1.msra.mxu0 0.0
        %1274 = vmatprep.subr.mxu0 0.0
        %1275 = vmatpush1.msra.mxu0 0.0
        %1276 = vmatprep.subr.mxu0 0.0
        %1277 = vmatpush1.msra.mxu0 0.0
        %1278 = vmatprep.subr.mxu0 0.0
        %1279 = vmatpush1.msra.mxu0 0.0
        %1280 = vmatprep.subr.mxu0 0.0
        %1281 = vmatpush1.msra.mxu0 0.0
        %1282 = vmatprep.subr.mxu0 0.0
        %1283 = vmatpush1.msra.mxu0 0.0
        %1284 = vmatprep.subr.mxu0 0.0
        %1285 = vmatpush1.msra.mxu0 0.0
        %1286 = vmatprep.subr.mxu0 0.0
        %1287 = vmatpush1.msra.mxu0 0.0
        %1288 = vmatprep.subr.mxu0 0.0
        %1289 = vmatpush1.msra.mxu0 0.0
        %1290 = vmatprep.subr.mxu0 0.0
        %1291 = vmatpush1.msra.mxu0 0.0
        %1292 = vmatprep.subr.mxu0 0.0
        %1293 = vmatpush1.msra.mxu0 0.0
        %1294 = vmatprep.subr.mxu0 0.0
        %1295 = vmatpush1.msra.mxu0 0.0
        %1296 = vmatprep.subr.mxu0 0.0
        %1297 = vmatpush1.msra.mxu0 0.0
        %1298 = vmatprep.subr.mxu0 0.0
        %1299 = vmatpush1.msra.mxu0 0.0
        %1300 = vmatprep.subr.mxu0 0.0
        %1301 = vmatpush1.msra.mxu0 0.0
        %1302 = vmatprep.subr.mxu0 0.0
        %1303 = vmatpush1.msra.mxu0 0.0
        %1304 = vmatprep.subr.mxu0 0.0
        %1305 = vmatpush1.msra.mxu0 0.0
        %1306 = vmatprep.subr.mxu0 0.0
        %1307 = vmatpush1.msra.mxu0 0.0
        %1308 = vmatprep.subr.mxu0 0.0
        %1309 = vmatpush1.msra.mxu0 0.0
        %1310 = vmatprep.subr.mxu0 0.0
        %1311 = vmatpush1.msra.mxu0 0.0
        %1312 = vmatprep.subr.mxu0 0.0
        %1313 = vmatpush1.msra.mxu0 0.0
        %1314 = vmatprep.subr.mxu0 0.0
        %1315 = vmatpush1.msra.mxu0 0.0
        %1316 = vmatprep.mubr.f32.mxu0 0.0
        %1317 = vmatmul.mubr.f32.gmra.mrb[0].mxu0 %v1250
        %v1318 = vpop.f32.mrb[0].mxu0
        %v1319 = vadd.f32 %v374, %v1318
        %v1320 = vpop.f32.mrb[0].mxu0
        %1321 = vdwg.mxu0
        %1322 = vrot.lane.b32.xlu0 %v1204, 64
        %v1323 = vpop.permute.xlu0 %1322
        %v1324 = vsel %vm381, %v1323, 0
        %1326 = vmatprep.subr.mxu0 0.0
        %1327 = vmatpush1.msra.mxu0 %v361
        %1328 = vmatprep.subr.mxu0 0.0
        %1329 = vmatpush1.msra.mxu0 %v362
        %1330 = vmatprep.subr.mxu0 0.0
        %1331 = vmatpush1.msra.mxu0 %v363
        %1332 = vmatprep.subr.mxu0 0.0
        %1333 = vmatpush1.msra.mxu0 %v364
        %1334 = vmatprep.subr.mxu0 0.0
        %1335 = vmatpush1.msra.mxu0 0.0
        %1336 = vmatprep.subr.mxu0 0.0
        %1337 = vmatpush1.msra.mxu0 0.0
        %1338 = vmatprep.subr.mxu0 0.0
        %1339 = vmatpush1.msra.mxu0 0.0
        %1340 = vmatprep.subr.mxu0 0.0
        %1341 = vmatpush1.msra.mxu0 0.0
        %1342 = vmatprep.subr.mxu0 0.0
        %1343 = vmatpush1.msra.mxu0 0.0
        %1344 = vmatprep.subr.mxu0 0.0
        %1345 = vmatpush1.msra.mxu0 0.0
        %1346 = vmatprep.subr.mxu0 0.0
        %1347 = vmatpush1.msra.mxu0 0.0
        %1348 = vmatprep.subr.mxu0 0.0
        %1349 = vmatpush1.msra.mxu0 0.0
        %1350 = vmatprep.subr.mxu0 0.0
        %1351 = vmatpush1.msra.mxu0 0.0
        %1352 = vmatprep.subr.mxu0 0.0
        %1353 = vmatpush1.msra.mxu0 0.0
        %1354 = vmatprep.subr.mxu0 0.0
        %1355 = vmatpush1.msra.mxu0 0.0
        %1356 = vmatprep.subr.mxu0 0.0
        %1357 = vmatpush1.msra.mxu0 0.0
        %1358 = vmatprep.subr.mxu0 0.0
        %1359 = vmatpush1.msra.mxu0 0.0
        %1360 = vmatprep.subr.mxu0 0.0
        %1361 = vmatpush1.msra.mxu0 0.0
        %1362 = vmatprep.subr.mxu0 0.0
        %1363 = vmatpush1.msra.mxu0 0.0
        %1364 = vmatprep.subr.mxu0 0.0
        %1365 = vmatpush1.msra.mxu0 0.0
        %1366 = vmatprep.subr.mxu0 0.0
        %1367 = vmatpush1.msra.mxu0 0.0
        %1368 = vmatprep.subr.mxu0 0.0
        %1369 = vmatpush1.msra.mxu0 0.0
        %1370 = vmatprep.subr.mxu0 0.0
        %1371 = vmatpush1.msra.mxu0 0.0
        %1372 = vmatprep.subr.mxu0 0.0
        %1373 = vmatpush1.msra.mxu0 0.0
        %1374 = vmatprep.subr.mxu0 0.0
        %1375 = vmatpush1.msra.mxu0 0.0
        %1376 = vmatprep.subr.mxu0 0.0
        %1377 = vmatpush1.msra.mxu0 0.0
        %1378 = vmatprep.subr.mxu0 0.0
        %1379 = vmatpush1.msra.mxu0 0.0
        %1380 = vmatprep.subr.mxu0 0.0
        %1381 = vmatpush1.msra.mxu0 0.0
        %1382 = vmatprep.subr.mxu0 0.0
        %1383 = vmatpush1.msra.mxu0 0.0
        %1384 = vmatprep.subr.mxu0 0.0
        %1385 = vmatpush1.msra.mxu0 0.0
        %1386 = vmatprep.subr.mxu0 0.0
        %1387 = vmatpush1.msra.mxu0 0.0
        %1388 = vmatprep.subr.mxu0 0.0
        %1389 = vmatpush1.msra.mxu0 0.0
        %1390 = vmatprep.mubr.f32.mxu0 0.0
        %1391 = vmatmul.mubr.f32.gmra.mrb[0].mxu0 %v1324
        %v1392 = vpop.f32.mrb[0].mxu0
        %v1393 = vadd.f32 0.0, %v1392
        %v1394 = vpop.f32.mrb[0].mxu0
        %1395 = vdwg.mxu0
        %v1396 = vadd.f32 %v1319, %v1393
        %v1397 = vxor.u32 %v1396, 2147483648
        %v1398 = vmul.f32 %v1397, 1.442695
        %v1399 = vpow.pop %v1398
        %v1400 = vadd.f32 %v1399, 1.0
        %v1401 = vrcp.pop %v1400
        %v1402 = vmul.f32 1.0, %v1401
        %v1403 = vtanh.pop %v1396
        %v1404 = vmul.f32 %v1402, %v1198
        %1406 = vrot.lane.b32.xlu0 %v1403, 32
        %v1407 = vpop.permute.xlu0 %1406
        %v1409 = vmul.f32 %v1402, %v1407
        %1411 = vrot.lane.b32.xlu0 %v1409, 32
        %v1412 = vpop.permute.xlu0 %1411
        %v1414 = vadd.f32 %v1404, %v1412
        %v1415 = vtanh.pop %v1414
        %1417 = vrot.lane.b32.xlu0 %v1415, 32
        %v1418 = vpop.permute.xlu0 %1417
        %v1420 = vmul.f32 %v1402, %v1418
        %v1423 = vunpack.c.l.s4 1966171168
        %v1424 = vunpack.c.0.s8 %v1423
        %v1425 = vlaneseq
        %v1426 = vshrl.u32 %v1425, 7
        %v1427 = vsub.s32 %v1424, %v1426
        %v1428 = vrot.slane %v1420, %v1427
        %v1429 = vcombine.high %v1428, %v1428
        %v1431 = vunpack.c.l.s4 1966171168
        %v1432 = vunpack.c.0.s8 %v1431
        %v1433 = vlaneseq
        %v1434 = vshrl.u32 %v1433, 7
        %v1435 = vsub.s32 %v1432, %v1434
        %v1436 = vrot.slane %v1428, %v1435
        %v1438 = vunpack.c.l.s4 1966171168
        %v1439 = vunpack.c.0.s8 %v1438
        %v1440 = vlaneseq
        %v1441 = vshrl.u32 %v1440, 7
        %v1442 = vsub.s32 %v1439, %v1441
        %v1443 = vrot.slane %v1429, %v1442
        %v1444 = vlaneseq
        %v1445 = vshrl.u32 %v1444, 7
        %v1446 = vsub.s32 0, %v1445
        %v1447 = vrot.slane %v1436, %v1446
        %v1448 = vlaneseq
        %v1449 = vshrl.u32 %v1448, 7
        %v1450 = vsub.s32 0, %v1449
        %v1451 = vrot.slane %v1443, %v1450
        %1452 = vrot.lane.b32.xlu0 %v1447, 64
        %v1453 = vpop.permute.xlu0 %1452
        %1454 = vrot.lane.b32.xlu0 %v1451, 64
        %v1455 = vpop.permute.xlu0 %1454
        %1458 = vst.msk [vmem:[%s343 + $0x4] sm:$0x1] %vm593, %v1453
        %1459 = vst.msk [vmem:[%s343 + $0xc] sm:$0x1] %vm593, %v1455
        %v1460 = vld [vmem:[%s307 + $0x5] sm:$0x1]
        %v1461 = vld [vmem:[%s307 + $0xd] sm:$0x1]
        %v1464 = vrot.slane %v1461, 7
        %v1465 = vsel %vm379, %v1464, %v1460
        %v1466 = vsel %vm381, %v1465, 0
        %1468 = vmatprep.subr.mxu0 0.0
        %1469 = vmatpush1.msra.mxu0 %v357
        %1470 = vmatprep.subr.mxu0 0.0
        %1471 = vmatpush1.msra.mxu0 %v358
        %1472 = vmatprep.subr.mxu0 0.0
        %1473 = vmatpush1.msra.mxu0 %v359
        %1474 = vmatprep.subr.mxu0 0.0
        %1475 = vmatpush1.msra.mxu0 %v360
        %1476 = vmatprep.subr.mxu0 0.0
        %1477 = vmatpush1.msra.mxu0 0.0
        %1478 = vmatprep.subr.mxu0 0.0
        %1479 = vmatpush1.msra.mxu0 0.0
        %1480 = vmatprep.subr.mxu0 0.0
        %1481 = vmatpush1.msra.mxu0 0.0
        %1482 = vmatprep.subr.mxu0 0.0
        %1483 = vmatpush1.msra.mxu0 0.0
        %1484 = vmatprep.subr.mxu0 0.0
        %1485 = vmatpush1.msra.mxu0 0.0
        %1486 = vmatprep.subr.mxu0 0.0
        %1487 = vmatpush1.msra.mxu0 0.0
        %1488 = vmatprep.subr.mxu0 0.0
        %1489 = vmatpush1.msra.mxu0 0.0
        %1490 = vmatprep.subr.mxu0 0.0
        %1491 = vmatpush1.msra.mxu0 0.0
        %1492 = vmatprep.subr.mxu0 0.0
        %1493 = vmatpush1.msra.mxu0 0.0
        %1494 = vmatprep.subr.mxu0 0.0
        %1495 = vmatpush1.msra.mxu0 0.0
        %1496 = vmatprep.subr.mxu0 0.0
        %1497 = vmatpush1.msra.mxu0 0.0
        %1498 = vmatprep.subr.mxu0 0.0
        %1499 = vmatpush1.msra.mxu0 0.0
        %1500 = vmatprep.subr.mxu0 0.0
        %1501 = vmatpush1.msra.mxu0 0.0
        %1502 = vmatprep.subr.mxu0 0.0
        %1503 = vmatpush1.msra.mxu0 0.0
        %1504 = vmatprep.subr.mxu0 0.0
        %1505 = vmatpush1.msra.mxu0 0.0
        %1506 = vmatprep.subr.mxu0 0.0
        %1507 = vmatpush1.msra.mxu0 0.0
        %1508 = vmatprep.subr.mxu0 0.0
        %1509 = vmatpush1.msra.mxu0 0.0
        %1510 = vmatprep.subr.mxu0 0.0
        %1511 = vmatpush1.msra.mxu0 0.0
        %1512 = vmatprep.subr.mxu0 0.0
        %1513 = vmatpush1.msra.mxu0 0.0
        %1514 = vmatprep.subr.mxu0 0.0
        %1515 = vmatpush1.msra.mxu0 0.0
        %1516 = vmatprep.subr.mxu0 0.0
        %1517 = vmatpush1.msra.mxu0 0.0
        %1518 = vmatprep.subr.mxu0 0.0
        %1519 = vmatpush1.msra.mxu0 0.0
        %1520 = vmatprep.subr.mxu0 0.0
        %1521 = vmatpush1.msra.mxu0 0.0
        %1522 = vmatprep.subr.mxu0 0.0
        %1523 = vmatpush1.msra.mxu0 0.0
        %1524 = vmatprep.subr.mxu0 0.0
        %1525 = vmatpush1.msra.mxu0 0.0
        %1526 = vmatprep.subr.mxu0 0.0
        %1527 = vmatpush1.msra.mxu0 0.0
        %1528 = vmatprep.subr.mxu0 0.0
        %1529 = vmatpush1.msra.mxu0 0.0
        %1530 = vmatprep.subr.mxu0 0.0
        %1531 = vmatpush1.msra.mxu0 0.0
        %1532 = vmatprep.mubr.f32.mxu0 0.0
        %1533 = vmatmul.mubr.f32.gmra.mrb[0].mxu0 %v1466
        %v1534 = vpop.f32.mrb[0].mxu0
        %v1535 = vadd.f32 %v374, %v1534
        %v1536 = vpop.f32.mrb[0].mxu0
        %1537 = vdwg.mxu0
        %1538 = vrot.lane.b32.xlu0 %v1420, 64
        %v1539 = vpop.permute.xlu0 %1538
        %v1540 = vsel %vm381, %v1539, 0
        %1542 = vmatprep.subr.mxu0 0.0
        %1543 = vmatpush1.msra.mxu0 %v361
        %1544 = vmatprep.subr.mxu0 0.0
        %1545 = vmatpush1.msra.mxu0 %v362
        %1546 = vmatprep.subr.mxu0 0.0
        %1547 = vmatpush1.msra.mxu0 %v363
        %1548 = vmatprep.subr.mxu0 0.0
        %1549 = vmatpush1.msra.mxu0 %v364
        %1550 = vmatprep.subr.mxu0 0.0
        %1551 = vmatpush1.msra.mxu0 0.0
        %1552 = vmatprep.subr.mxu0 0.0
        %1553 = vmatpush1.msra.mxu0 0.0
        %1554 = vmatprep.subr.mxu0 0.0
        %1555 = vmatpush1.msra.mxu0 0.0
        %1556 = vmatprep.subr.mxu0 0.0
        %1557 = vmatpush1.msra.mxu0 0.0
        %1558 = vmatprep.subr.mxu0 0.0
        %1559 = vmatpush1.msra.mxu0 0.0
        %1560 = vmatprep.subr.mxu0 0.0
        %1561 = vmatpush1.msra.mxu0 0.0
        %1562 = vmatprep.subr.mxu0 0.0
        %1563 = vmatpush1.msra.mxu0 0.0
        %1564 = vmatprep.subr.mxu0 0.0
        %1565 = vmatpush1.msra.mxu0 0.0
        %1566 = vmatprep.subr.mxu0 0.0
        %1567 = vmatpush1.msra.mxu0 0.0
        %1568 = vmatprep.subr.mxu0 0.0
        %1569 = vmatpush1.msra.mxu0 0.0
        %1570 = vmatprep.subr.mxu0 0.0
        %1571 = vmatpush1.msra.mxu0 0.0
        %1572 = vmatprep.subr.mxu0 0.0
        %1573 = vmatpush1.msra.mxu0 0.0
        %1574 = vmatprep.subr.mxu0 0.0
        %1575 = vmatpush1.msra.mxu0 0.0
        %1576 = vmatprep.subr.mxu0 0.0
        %1577 = vmatpush1.msra.mxu0 0.0
        %1578 = vmatprep.subr.mxu0 0.0
        %1579 = vmatpush1.msra.mxu0 0.0
        %1580 = vmatprep.subr.mxu0 0.0
        %1581 = vmatpush1.msra.mxu0 0.0
        %1582 = vmatprep.subr.mxu0 0.0
        %1583 = vmatpush1.msra.mxu0 0.0
        %1584 = vmatprep.subr.mxu0 0.0
        %1585 = vmatpush1.msra.mxu0 0.0
        %1586 = vmatprep.subr.mxu0 0.0
        %1587 = vmatpush1.msra.mxu0 0.0
        %1588 = vmatprep.subr.mxu0 0.0
        %1589 = vmatpush1.msra.mxu0 0.0
        %1590 = vmatprep.subr.mxu0 0.0
        %1591 = vmatpush1.msra.mxu0 0.0
        %1592 = vmatprep.subr.mxu0 0.0
        %1593 = vmatpush1.msra.mxu0 0.0
        %1594 = vmatprep.subr.mxu0 0.0
        %1595 = vmatpush1.msra.mxu0 0.0
        %1596 = vmatprep.subr.mxu0 0.0
        %1597 = vmatpush1.msra.mxu0 0.0
        %1598 = vmatprep.subr.mxu0 0.0
        %1599 = vmatpush1.msra.mxu0 0.0
        %1600 = vmatprep.subr.mxu0 0.0
        %1601 = vmatpush1.msra.mxu0 0.0
        %1602 = vmatprep.subr.mxu0 0.0
        %1603 = vmatpush1.msra.mxu0 0.0
        %1604 = vmatprep.subr.mxu0 0.0
        %1605 = vmatpush1.msra.mxu0 0.0
        %1606 = vmatprep.mubr.f32.mxu0 0.0
        %1607 = vmatmul.mubr.f32.gmra.mrb[0].mxu0 %v1540
        %v1608 = vpop.f32.mrb[0].mxu0
        %v1609 = vadd.f32 0.0, %v1608
        %v1610 = vpop.f32.mrb[0].mxu0
        %1611 = vdwg.mxu0
        %v1612 = vadd.f32 %v1535, %v1609
        %v1613 = vxor.u32 %v1612, 2147483648
        %v1614 = vmul.f32 %v1613, 1.442695
        %v1615 = vpow.pop %v1614
        %v1616 = vadd.f32 %v1615, 1.0
        %v1617 = vrcp.pop %v1616
        %v1618 = vmul.f32 1.0, %v1617
        %v1619 = vtanh.pop %v1612
        %v1620 = vmul.f32 %v1618, %v1414
        %1622 = vrot.lane.b32.xlu0 %v1619, 32
        %v1623 = vpop.permute.xlu0 %1622
        %v1625 = vmul.f32 %v1618, %v1623
        %1627 = vrot.lane.b32.xlu0 %v1625, 32
        %v1628 = vpop.permute.xlu0 %1627
        %v1630 = vadd.f32 %v1620, %v1628
        %v1631 = vtanh.pop %v1630
        %1633 = vrot.lane.b32.xlu0 %v1631, 32
        %v1634 = vpop.permute.xlu0 %1633
        %v1636 = vmul.f32 %v1618, %v1634
        %v1639 = vunpack.c.l.s4 1966171168
        %v1640 = vunpack.c.0.s8 %v1639
        %v1641 = vlaneseq
        %v1642 = vshrl.u32 %v1641, 7
        %v1643 = vsub.s32 %v1640, %v1642
        %v1644 = vrot.slane %v1636, %v1643
        %v1645 = vcombine.high %v1644, %v1644
        %v1647 = vunpack.c.l.s4 1966171168
        %v1648 = vunpack.c.0.s8 %v1647
        %v1649 = vlaneseq
        %v1650 = vshrl.u32 %v1649, 7
        %v1651 = vsub.s32 %v1648, %v1650
        %v1652 = vrot.slane %v1644, %v1651
        %v1654 = vunpack.c.l.s4 1966171168
        %v1655 = vunpack.c.0.s8 %v1654
        %v1656 = vlaneseq
        %v1657 = vshrl.u32 %v1656, 7
        %v1658 = vsub.s32 %v1655, %v1657
        %v1659 = vrot.slane %v1645, %v1658
        %v1660 = vlaneseq
        %v1661 = vshrl.u32 %v1660, 7
        %v1662 = vsub.s32 0, %v1661
        %v1663 = vrot.slane %v1652, %v1662
        %v1664 = vlaneseq
        %v1665 = vshrl.u32 %v1664, 7
        %v1666 = vsub.s32 0, %v1665
        %v1667 = vrot.slane %v1659, %v1666
        %1668 = vrot.lane.b32.xlu0 %v1663, 64
        %v1669 = vpop.permute.xlu0 %1668
        %1670 = vrot.lane.b32.xlu0 %v1667, 64
        %v1671 = vpop.permute.xlu0 %1670
        %1674 = vst.msk [vmem:[%s343 + $0x5] sm:$0x1] %vm593, %v1669
        %1675 = vst.msk [vmem:[%s343 + $0xd] sm:$0x1] %vm593, %v1671
        %v1676 = vld [vmem:[%s307 + $0x6] sm:$0x1]
        %v1677 = vld [vmem:[%s307 + $0xe] sm:$0x1]
        %v1680 = vrot.slane %v1677, 7
        %v1681 = vsel %vm379, %v1680, %v1676
        %v1682 = vsel %vm381, %v1681, 0
        %1684 = vmatprep.subr.mxu0 0.0
        %1685 = vmatpush1.msra.mxu0 %v357
        %1686 = vmatprep.subr.mxu0 0.0
        %1687 = vmatpush1.msra.mxu0 %v358
        %1688 = vmatprep.subr.mxu0 0.0
        %1689 = vmatpush1.msra.mxu0 %v359
        %1690 = vmatprep.subr.mxu0 0.0
        %1691 = vmatpush1.msra.mxu0 %v360
        %1692 = vmatprep.subr.mxu0 0.0
        %1693 = vmatpush1.msra.mxu0 0.0
        %1694 = vmatprep.subr.mxu0 0.0
        %1695 = vmatpush1.msra.mxu0 0.0
        %1696 = vmatprep.subr.mxu0 0.0
        %1697 = vmatpush1.msra.mxu0 0.0
        %1698 = vmatprep.subr.mxu0 0.0
        %1699 = vmatpush1.msra.mxu0 0.0
        %1700 = vmatprep.subr.mxu0 0.0
        %1701 = vmatpush1.msra.mxu0 0.0
        %1702 = vmatprep.subr.mxu0 0.0
        %1703 = vmatpush1.msra.mxu0 0.0
        %1704 = vmatprep.subr.mxu0 0.0
        %1705 = vmatpush1.msra.mxu0 0.0
        %1706 = vmatprep.subr.mxu0 0.0
        %1707 = vmatpush1.msra.mxu0 0.0
        %1708 = vmatprep.subr.mxu0 0.0
        %1709 = vmatpush1.msra.mxu0 0.0
        %1710 = vmatprep.subr.mxu0 0.0
        %1711 = vmatpush1.msra.mxu0 0.0
        %1712 = vmatprep.subr.mxu0 0.0
        %1713 = vmatpush1.msra.mxu0 0.0
        %1714 = vmatprep.subr.mxu0 0.0
        %1715 = vmatpush1.msra.mxu0 0.0
        %1716 = vmatprep.subr.mxu0 0.0
        %1717 = vmatpush1.msra.mxu0 0.0
        %1718 = vmatprep.subr.mxu0 0.0
        %1719 = vmatpush1.msra.mxu0 0.0
        %1720 = vmatprep.subr.mxu0 0.0
        %1721 = vmatpush1.msra.mxu0 0.0
        %1722 = vmatprep.subr.mxu0 0.0
        %1723 = vmatpush1.msra.mxu0 0.0
        %1724 = vmatprep.subr.mxu0 0.0
        %1725 = vmatpush1.msra.mxu0 0.0
        %1726 = vmatprep.subr.mxu0 0.0
        %1727 = vmatpush1.msra.mxu0 0.0
        %1728 = vmatprep.subr.mxu0 0.0
        %1729 = vmatpush1.msra.mxu0 0.0
        %1730 = vmatprep.subr.mxu0 0.0
        %1731 = vmatpush1.msra.mxu0 0.0
        %1732 = vmatprep.subr.mxu0 0.0
        %1733 = vmatpush1.msra.mxu0 0.0
        %1734 = vmatprep.subr.mxu0 0.0
        %1735 = vmatpush1.msra.mxu0 0.0
        %1736 = vmatprep.subr.mxu0 0.0
        %1737 = vmatpush1.msra.mxu0 0.0
        %1738 = vmatprep.subr.mxu0 0.0
        %1739 = vmatpush1.msra.mxu0 0.0
        %1740 = vmatprep.subr.mxu0 0.0
        %1741 = vmatpush1.msra.mxu0 0.0
        %1742 = vmatprep.subr.mxu0 0.0
        %1743 = vmatpush1.msra.mxu0 0.0
        %1744 = vmatprep.subr.mxu0 0.0
        %1745 = vmatpush1.msra.mxu0 0.0
        %1746 = vmatprep.subr.mxu0 0.0
        %1747 = vmatpush1.msra.mxu0 0.0
        %1748 = vmatprep.mubr.f32.mxu0 0.0
        %1749 = vmatmul.mubr.f32.gmra.mrb[0].mxu0 %v1682
        %v1750 = vpop.f32.mrb[0].mxu0
        %v1751 = vadd.f32 %v374, %v1750
        %v1752 = vpop.f32.mrb[0].mxu0
        %1753 = vdwg.mxu0
        %1754 = vrot.lane.b32.xlu0 %v1636, 64
        %v1755 = vpop.permute.xlu0 %1754
        %v1756 = vsel %vm381, %v1755, 0
        %1758 = vmatprep.subr.mxu0 0.0
        %1759 = vmatpush1.msra.mxu0 %v361
        %1760 = vmatprep.subr.mxu0 0.0
        %1761 = vmatpush1.msra.mxu0 %v362
        %1762 = vmatprep.subr.mxu0 0.0
        %1763 = vmatpush1.msra.mxu0 %v363
        %1764 = vmatprep.subr.mxu0 0.0
        %1765 = vmatpush1.msra.mxu0 %v364
        %1766 = vmatprep.subr.mxu0 0.0
        %1767 = vmatpush1.msra.mxu0 0.0
        %1768 = vmatprep.subr.mxu0 0.0
        %1769 = vmatpush1.msra.mxu0 0.0
        %1770 = vmatprep.subr.mxu0 0.0
        %1771 = vmatpush1.msra.mxu0 0.0
        %1772 = vmatprep.subr.mxu0 0.0
        %1773 = vmatpush1.msra.mxu0 0.0
        %1774 = vmatprep.subr.mxu0 0.0
        %1775 = vmatpush1.msra.mxu0 0.0
        %1776 = vmatprep.subr.mxu0 0.0
        %1777 = vmatpush1.msra.mxu0 0.0
        %1778 = vmatprep.subr.mxu0 0.0
        %1779 = vmatpush1.msra.mxu0 0.0
        %1780 = vmatprep.subr.mxu0 0.0
        %1781 = vmatpush1.msra.mxu0 0.0
        %1782 = vmatprep.subr.mxu0 0.0
        %1783 = vmatpush1.msra.mxu0 0.0
        %1784 = vmatprep.subr.mxu0 0.0
        %1785 = vmatpush1.msra.mxu0 0.0
        %1786 = vmatprep.subr.mxu0 0.0
        %1787 = vmatpush1.msra.mxu0 0.0
        %1788 = vmatprep.subr.mxu0 0.0
        %1789 = vmatpush1.msra.mxu0 0.0
        %1790 = vmatprep.subr.mxu0 0.0
        %1791 = vmatpush1.msra.mxu0 0.0
        %1792 = vmatprep.subr.mxu0 0.0
        %1793 = vmatpush1.msra.mxu0 0.0
        %1794 = vmatprep.subr.mxu0 0.0
        %1795 = vmatpush1.msra.mxu0 0.0
        %1796 = vmatprep.subr.mxu0 0.0
        %1797 = vmatpush1.msra.mxu0 0.0
        %1798 = vmatprep.subr.mxu0 0.0
        %1799 = vmatpush1.msra.mxu0 0.0
        %1800 = vmatprep.subr.mxu0 0.0
        %1801 = vmatpush1.msra.mxu0 0.0
        %1802 = vmatprep.subr.mxu0 0.0
        %1803 = vmatpush1.msra.mxu0 0.0
        %1804 = vmatprep.subr.mxu0 0.0
        %1805 = vmatpush1.msra.mxu0 0.0
        %1806 = vmatprep.subr.mxu0 0.0
        %1807 = vmatpush1.msra.mxu0 0.0
        %1808 = vmatprep.subr.mxu0 0.0
        %1809 = vmatpush1.msra.mxu0 0.0
        %1810 = vmatprep.subr.mxu0 0.0
        %1811 = vmatpush1.msra.mxu0 0.0
        %1812 = vmatprep.subr.mxu0 0.0
        %1813 = vmatpush1.msra.mxu0 0.0
        %1814 = vmatprep.subr.mxu0 0.0
        %1815 = vmatpush1.msra.mxu0 0.0
        %1816 = vmatprep.subr.mxu0 0.0
        %1817 = vmatpush1.msra.mxu0 0.0
        %1818 = vmatprep.subr.mxu0 0.0
        %1819 = vmatpush1.msra.mxu0 0.0
        %1820 = vmatprep.subr.mxu0 0.0
        %1821 = vmatpush1.msra.mxu0 0.0
        %1822 = vmatprep.mubr.f32.mxu0 0.0
        %1823 = vmatmul.mubr.f32.gmra.mrb[0].mxu0 %v1756
        %v1824 = vpop.f32.mrb[0].mxu0
        %v1825 = vadd.f32 0.0, %v1824
        %v1826 = vpop.f32.mrb[0].mxu0
        %1827 = vdwg.mxu0
        %v1828 = vadd.f32 %v1751, %v1825
        %v1829 = vxor.u32 %v1828, 2147483648
        %v1830 = vmul.f32 %v1829, 1.442695
        %v1831 = vpow.pop %v1830
        %v1832 = vadd.f32 %v1831, 1.0
        %v1833 = vrcp.pop %v1832
        %v1834 = vmul.f32 1.0, %v1833
        %v1835 = vtanh.pop %v1828
        %v1836 = vmul.f32 %v1834, %v1630
        %1838 = vrot.lane.b32.xlu0 %v1835, 32
        %v1839 = vpop.permute.xlu0 %1838
        %v1841 = vmul.f32 %v1834, %v1839
        %1843 = vrot.lane.b32.xlu0 %v1841, 32
        %v1844 = vpop.permute.xlu0 %1843
        %v1846 = vadd.f32 %v1836, %v1844
        %v1847 = vtanh.pop %v1846
        %1849 = vrot.lane.b32.xlu0 %v1847, 32
        %v1850 = vpop.permute.xlu0 %1849
        %v1852 = vmul.f32 %v1834, %v1850
        %v1855 = vunpack.c.l.s4 1966171168
        %v1856 = vunpack.c.0.s8 %v1855
        %v1857 = vlaneseq
        %v1858 = vshrl.u32 %v1857, 7
        %v1859 = vsub.s32 %v1856, %v1858
        %v1860 = vrot.slane %v1852, %v1859
        %v1861 = vcombine.high %v1860, %v1860
        %v1863 = vunpack.c.l.s4 1966171168
        %v1864 = vunpack.c.0.s8 %v1863
        %v1865 = vlaneseq
        %v1866 = vshrl.u32 %v1865, 7
        %v1867 = vsub.s32 %v1864, %v1866
        %v1868 = vrot.slane %v1860, %v1867
        %v1870 = vunpack.c.l.s4 1966171168
        %v1871 = vunpack.c.0.s8 %v1870
        %v1872 = vlaneseq
        %v1873 = vshrl.u32 %v1872, 7
        %v1874 = vsub.s32 %v1871, %v1873
        %v1875 = vrot.slane %v1861, %v1874
        %v1876 = vlaneseq
        %v1877 = vshrl.u32 %v1876, 7
        %v1878 = vsub.s32 0, %v1877
        %v1879 = vrot.slane %v1868, %v1878
        %v1880 = vlaneseq
        %v1881 = vshrl.u32 %v1880, 7
        %v1882 = vsub.s32 0, %v1881
        %v1883 = vrot.slane %v1875, %v1882
        %1884 = vrot.lane.b32.xlu0 %v1879, 64
        %v1885 = vpop.permute.xlu0 %1884
        %1886 = vrot.lane.b32.xlu0 %v1883, 64
        %v1887 = vpop.permute.xlu0 %1886
        %1890 = vst.msk [vmem:[%s343 + $0x6] sm:$0x1] %vm593, %v1885
        %1891 = vst.msk [vmem:[%s343 + $0xe] sm:$0x1] %vm593, %v1887
        %v1892 = vld [vmem:[%s307 + $0x7] sm:$0x1]
        %v1893 = vld [vmem:[%s307 + $0xf] sm:$0x1]
        %v1896 = vrot.slane %v1893, 7
        %v1897 = vsel %vm379, %v1896, %v1892
        %v1898 = vsel %vm381, %v1897, 0
        %1900 = vmatprep.subr.mxu0 0.0
        %1901 = vmatpush1.msra.mxu0 %v357
        %1902 = vmatprep.subr.mxu0 0.0
        %1903 = vmatpush1.msra.mxu0 %v358
        %1904 = vmatprep.subr.mxu0 0.0
        %1905 = vmatpush1.msra.mxu0 %v359
        %1906 = vmatprep.subr.mxu0 0.0
        %1907 = vmatpush1.msra.mxu0 %v360
        %1908 = vmatprep.subr.mxu0 0.0
        %1909 = vmatpush1.msra.mxu0 0.0
        %1910 = vmatprep.subr.mxu0 0.0
        %1911 = vmatpush1.msra.mxu0 0.0
        %1912 = vmatprep.subr.mxu0 0.0
        %1913 = vmatpush1.msra.mxu0 0.0
        %1914 = vmatprep.subr.mxu0 0.0
        %1915 = vmatpush1.msra.mxu0 0.0
        %1916 = vmatprep.subr.mxu0 0.0
        %1917 = vmatpush1.msra.mxu0 0.0
        %1918 = vmatprep.subr.mxu0 0.0
        %1919 = vmatpush1.msra.mxu0 0.0
        %1920 = vmatprep.subr.mxu0 0.0
        %1921 = vmatpush1.msra.mxu0 0.0
        %1922 = vmatprep.subr.mxu0 0.0
        %1923 = vmatpush1.msra.mxu0 0.0
        %1924 = vmatprep.subr.mxu0 0.0
        %1925 = vmatpush1.msra.mxu0 0.0
        %1926 = vmatprep.subr.mxu0 0.0
        %1927 = vmatpush1.msra.mxu0 0.0
        %1928 = vmatprep.subr.mxu0 0.0
        %1929 = vmatpush1.msra.mxu0 0.0
        %1930 = vmatprep.subr.mxu0 0.0
        %1931 = vmatpush1.msra.mxu0 0.0
        %1932 = vmatprep.subr.mxu0 0.0
        %1933 = vmatpush1.msra.mxu0 0.0
        %1934 = vmatprep.subr.mxu0 0.0
        %1935 = vmatpush1.msra.mxu0 0.0
        %1936 = vmatprep.subr.mxu0 0.0
        %1937 = vmatpush1.msra.mxu0 0.0
        %1938 = vmatprep.subr.mxu0 0.0
        %1939 = vmatpush1.msra.mxu0 0.0
        %1940 = vmatprep.subr.mxu0 0.0
        %1941 = vmatpush1.msra.mxu0 0.0
        %1942 = vmatprep.subr.mxu0 0.0
        %1943 = vmatpush1.msra.mxu0 0.0
        %1944 = vmatprep.subr.mxu0 0.0
        %1945 = vmatpush1.msra.mxu0 0.0
        %1946 = vmatprep.subr.mxu0 0.0
        %1947 = vmatpush1.msra.mxu0 0.0
        %1948 = vmatprep.subr.mxu0 0.0
        %1949 = vmatpush1.msra.mxu0 0.0
        %1950 = vmatprep.subr.mxu0 0.0
        %1951 = vmatpush1.msra.mxu0 0.0
        %1952 = vmatprep.subr.mxu0 0.0
        %1953 = vmatpush1.msra.mxu0 0.0
        %1954 = vmatprep.subr.mxu0 0.0
        %1955 = vmatpush1.msra.mxu0 0.0
        %1956 = vmatprep.subr.mxu0 0.0
        %1957 = vmatpush1.msra.mxu0 0.0
        %1958 = vmatprep.subr.mxu0 0.0
        %1959 = vmatpush1.msra.mxu0 0.0
        %1960 = vmatprep.subr.mxu0 0.0
        %1961 = vmatpush1.msra.mxu0 0.0
        %1962 = vmatprep.subr.mxu0 0.0
        %1963 = vmatpush1.msra.mxu0 0.0
        %1964 = vmatprep.mubr.f32.mxu0 0.0
        %1965 = vmatmul.mubr.f32.gmra.mrb[0].mxu0 %v1898
        %v1966 = vpop.f32.mrb[0].mxu0
        %v1967 = vadd.f32 %v374, %v1966
        %v1968 = vpop.f32.mrb[0].mxu0
        %1969 = vdwg.mxu0
        %1970 = vrot.lane.b32.xlu0 %v1852, 64
        %v1971 = vpop.permute.xlu0 %1970
        %v1972 = vsel %vm381, %v1971, 0
        %1974 = vmatprep.subr.mxu0 0.0
        %1975 = vmatpush1.msra.mxu0 %v361
        %1976 = vmatprep.subr.mxu0 0.0
        %1977 = vmatpush1.msra.mxu0 %v362
        %1978 = vmatprep.subr.mxu0 0.0
        %1979 = vmatpush1.msra.mxu0 %v363
        %1980 = vmatprep.subr.mxu0 0.0
        %1981 = vmatpush1.msra.mxu0 %v364
        %1982 = vmatprep.subr.mxu0 0.0
        %1983 = vmatpush1.msra.mxu0 0.0
        %1984 = vmatprep.subr.mxu0 0.0
        %1985 = vmatpush1.msra.mxu0 0.0
        %1986 = vmatprep.subr.mxu0 0.0
        %1987 = vmatpush1.msra.mxu0 0.0
        %1988 = vmatprep.subr.mxu0 0.0
        %1989 = vmatpush1.msra.mxu0 0.0
        %1990 = vmatprep.subr.mxu0 0.0
        %1991 = vmatpush1.msra.mxu0 0.0
        %1992 = vmatprep.subr.mxu0 0.0
        %1993 = vmatpush1.msra.mxu0 0.0
        %1994 = vmatprep.subr.mxu0 0.0
        %1995 = vmatpush1.msra.mxu0 0.0
        %1996 = vmatprep.subr.mxu0 0.0
        %1997 = vmatpush1.msra.mxu0 0.0
        %1998 = vmatprep.subr.mxu0 0.0
        %1999 = vmatpush1.msra.mxu0 0.0
        %2000 = vmatprep.subr.mxu0 0.0
        %2001 = vmatpush1.msra.mxu0 0.0
        %2002 = vmatprep.subr.mxu0 0.0
        %2003 = vmatpush1.msra.mxu0 0.0
        %2004 = vmatprep.subr.mxu0 0.0
        %2005 = vmatpush1.msra.mxu0 0.0
        %2006 = vmatprep.subr.mxu0 0.0
        %2007 = vmatpush1.msra.mxu0 0.0
        %2008 = vmatprep.subr.mxu0 0.0
        %2009 = vmatpush1.msra.mxu0 0.0
        %2010 = vmatprep.subr.mxu0 0.0
        %2011 = vmatpush1.msra.mxu0 0.0
        %2012 = vmatprep.subr.mxu0 0.0
        %2013 = vmatpush1.msra.mxu0 0.0
        %2014 = vmatprep.subr.mxu0 0.0
        %2015 = vmatpush1.msra.mxu0 0.0
        %2016 = vmatprep.subr.mxu0 0.0
        %2017 = vmatpush1.msra.mxu0 0.0
        %2018 = vmatprep.subr.mxu0 0.0
        %2019 = vmatpush1.msra.mxu0 0.0
        %2020 = vmatprep.subr.mxu0 0.0
        %2021 = vmatpush1.msra.mxu0 0.0
        %2022 = vmatprep.subr.mxu0 0.0
        %2023 = vmatpush1.msra.mxu0 0.0
        %2024 = vmatprep.subr.mxu0 0.0
        %2025 = vmatpush1.msra.mxu0 0.0
        %2026 = vmatprep.subr.mxu0 0.0
        %2027 = vmatpush1.msra.mxu0 0.0
        %2028 = vmatprep.subr.mxu0 0.0
        %2029 = vmatpush1.msra.mxu0 0.0
        %2030 = vmatprep.subr.mxu0 0.0
        %2031 = vmatpush1.msra.mxu0 0.0
        %2032 = vmatprep.subr.mxu0 0.0
        %2033 = vmatpush1.msra.mxu0 0.0
        %2034 = vmatprep.subr.mxu0 0.0
        %2035 = vmatpush1.msra.mxu0 0.0
        %2036 = vmatprep.subr.mxu0 0.0
        %2037 = vmatpush1.msra.mxu0 0.0
        %2038 = vmatprep.mubr.f32.mxu0 0.0
        %2039 = vmatmul.mubr.f32.gmra.mrb[0].mxu0 %v1972
        %v2040 = vpop.f32.mrb[0].mxu0
        %v2041 = vadd.f32 0.0, %v2040
        %v2042 = vpop.f32.mrb[0].mxu0
        %2043 = vdwg.mxu0
        %v2044 = vadd.f32 %v1967, %v2041
        %v2045 = vxor.u32 %v2044, 2147483648
        %v2046 = vmul.f32 %v2045, 1.442695
        %v2047 = vpow.pop %v2046
        %v2048 = vadd.f32 %v2047, 1.0
        %v2049 = vrcp.pop %v2048
        %v2050 = vmul.f32 1.0, %v2049
        %v2051 = vtanh.pop %v2044
        %v2052 = vmul.f32 %v2050, %v1846
        %2054 = vrot.lane.b32.xlu0 %v2051, 32
        %v2055 = vpop.permute.xlu0 %2054
        %v2057 = vmul.f32 %v2050, %v2055
        %2059 = vrot.lane.b32.xlu0 %v2057, 32
        %v2060 = vpop.permute.xlu0 %2059
        %v2062 = vadd.f32 %v2052, %v2060
        %v2063 = vtanh.pop %v2062
        %2065 = vrot.lane.b32.xlu0 %v2063, 32
        %v2066 = vpop.permute.xlu0 %2065
        %v2068 = vmul.f32 %v2050, %v2066
        %v2071 = vunpack.c.l.s4 1966171168
        %v2072 = vunpack.c.0.s8 %v2071
        %v2073 = vlaneseq
        %v2074 = vshrl.u32 %v2073, 7
        %v2075 = vsub.s32 %v2072, %v2074
        %v2076 = vrot.slane %v2068, %v2075
        %v2077 = vcombine.high %v2076, %v2076
        %v2079 = vunpack.c.l.s4 1966171168
        %v2080 = vunpack.c.0.s8 %v2079
        %v2081 = vlaneseq
        %v2082 = vshrl.u32 %v2081, 7
        %v2083 = vsub.s32 %v2080, %v2082
        %v2084 = vrot.slane %v2076, %v2083
        %v2086 = vunpack.c.l.s4 1966171168
        %v2087 = vunpack.c.0.s8 %v2086
        %v2088 = vlaneseq
        %v2089 = vshrl.u32 %v2088, 7
        %v2090 = vsub.s32 %v2087, %v2089
        %v2091 = vrot.slane %v2077, %v2090
        %v2092 = vlaneseq
        %v2093 = vshrl.u32 %v2092, 7
        %v2094 = vsub.s32 0, %v2093
        %v2095 = vrot.slane %v2084, %v2094
        %v2096 = vlaneseq
        %v2097 = vshrl.u32 %v2096, 7
        %v2098 = vsub.s32 0, %v2097
        %v2099 = vrot.slane %v2091, %v2098
        %2100 = vrot.lane.b32.xlu0 %v2095, 64
        %v2101 = vpop.permute.xlu0 %2100
        %2102 = vrot.lane.b32.xlu0 %v2099, 64
        %v2103 = vpop.permute.xlu0 %2102
        %2106 = vst.msk [vmem:[%s343 + $0x7] sm:$0x1] %vm593, %v2101
        %2107 = vst.msk [vmem:[%s343 + $0xf] sm:$0x1] %vm593, %v2103
        %2108 = vrot.lane.b32.xlu0 %v2068, 64
        %v2109 = vpop.permute.xlu0 %2108
        %vm2111 = vcmask 254976
        %2112 = vst.msk [vmem:[#allocation2] sm:$0x3] %vm2111, %v2109
        %2114 = vrot.lane.b32.xlu0 %v2062, 96
        %v2115 = vpop.permute.xlu0 %2114
        %2117 = vst.msk [vmem:[#allocation3] sm:$0x3] %vm2111, %v2115
        %p2118 = scmp.eq.s32.totalorder %s28, 1
        // Predicated region
        $region61: #{lstm_pallas.1} parent=43 // pred_check
          %p2119 = pneg %p2118
        $region62: #{lstm_pallas.1} parent=43 // pred_check_branch
          %2121 = sbr.rel (%p2119) target = $region64
        $region63: #{lstm_pallas.1} parent=43 // pred_region
          %2122 = vst.msk [vmem:[#allocation11] sm:$0x3] %vm2111, %v2109
          %2123 = vst.msk [vmem:[#allocation13] sm:$0x3] %vm2111, %v2115
        $region64: #{lstm_pallas.1} parent=43 // pred_fallthru
          _
        %s2124 = sand.u32 %s167, 1
        %s2125 = scalar_lea.sflag [#allocation6], %s2124
        %s2126 = sand.u32 %s167, 1
        %s2127 = smul.addr %s2126, 16
        %s2128 = scalar_lea.vmem [#allocation10], %s2127
        // Predicated region
        $region65: #{lstm_pallas.1} parent=43 // pred_check
          %p2129 = pneg %p177
        $region66: #{lstm_pallas.1} parent=43 // pred_check_branch
          %2131 = sbr.rel (%p2129) target = $region68
        $region67: #{lstm_pallas.1} parent=43 // pred_region
          %s2133 = ssub.s32 256, 256
          %2134 = vsyncadd %s2125, %s2133
          %s2135 = smul.addr %s28, 128
          %s2136 = scalar_lea.hbm %s6, %s2135
          %s2137 = sshll.u32 %s2128, 4
          %s2138 = int_to_ptr.vmem [resolvable:$true] %s2137
          %2143 = dma.vmem_to_hbm [thread:$0]  %s2138, 256, %s2136, %s2125, 128, 256, 8
        $region68: #{lstm_pallas.1} parent=43 // pred_fallthru
          _
        // Predicated region
        $region69: #{lstm_pallas.1} parent=43 // pred_check
          %p2144 = pneg %p198
        $region70: #{lstm_pallas.1} parent=43 // pred_check_branch
          %2146 = sbr.rel (%p2144) target = $region72
        $region71: #{lstm_pallas.1} parent=43 // pred_region
          %s2148 = ssub.s32 32, 32
          %2149 = vsyncadd [#allocation12], %s2148
          %s2151 = sshll.u32 [#allocation11], 4
          %s2152 = int_to_ptr.vmem [resolvable:$true] %s2151
          %2154 = dma.vmem_to_hbm [thread:$0]  %s2152, 32, %s7, [#allocation12]
        $region72: #{lstm_pallas.1} parent=43 // pred_fallthru
          _
        // Predicated region
        $region73: #{lstm_pallas.1} parent=43 // pred_check
          %p2155 = pneg %p219
        $region74: #{lstm_pallas.1} parent=43 // pred_check_branch
          %2157 = sbr.rel (%p2155) target = $region76
        $region75: #{lstm_pallas.1} parent=43 // pred_region
          %s2159 = ssub.s32 32, 32
          %2160 = vsyncadd [#allocation12], %s2159
          %s2162 = sshll.u32 [#allocation13], 4
          %s2163 = int_to_ptr.vmem [resolvable:$true] %s2162
          %2165 = dma.vmem_to_hbm [thread:$0]  %s2163, 32, %s8, [#allocation12]
        $region76: #{lstm_pallas.1} parent=43 // pred_fallthru
          _
        // Predicated region
        $region77: #{lstm_pallas.1} parent=43 // pred_check
          %p2166 = pneg %p198
        $region78: #{lstm_pallas.1} parent=43 // pred_check_branch
          %2168 = sbr.rel (%p2166) target = $region80
        $region79: #{lstm_pallas.1} parent=43 // pred_region
          %2169 = dma.done [#allocation12], 32
        $region80: #{lstm_pallas.1} parent=43 // pred_fallthru
          _
        // Predicated region
        $region81: #{lstm_pallas.1} parent=43 // pred_check
          %p2170 = pneg %p219
        $region82: #{lstm_pallas.1} parent=43 // pred_check_branch
          %2172 = sbr.rel (%p2170) target = $region84
        $region83: #{lstm_pallas.1} parent=43 // pred_region
          %2173 = dma.done [#allocation12], 32
        $region84: #{lstm_pallas.1} parent=43 // pred_fallthru
          _
      $region44: #{lstm_pallas.1} parent=5 // pred_fallthru
        _
      %p2174 = scmp.le.s32.totalorder 2, %s23
      // Predicated region
      $region85: #{lstm_pallas.1} parent=5 // pred_check
        %p2175 = pneg %p2174
      $region86: #{lstm_pallas.1} parent=5 // pred_check_branch
        %2177 = sbr.rel (%p2175) target = $region88
      $region87: #{lstm_pallas.1} parent=5 // pred_region
        %s2178 = ssub.s32 %s23, 2
        // Predicated region
        $region89: #{lstm_pallas.1} parent=87 // pred_check
          %p2179 = pneg %p183
        $region90: #{lstm_pallas.1} parent=87 // pred_check_branch
          %2181 = sbr.rel (%p2179) target = $region92
        $region91: #{lstm_pallas.1} parent=87 // pred_region
          %s2182 = sand.u32 %s168, 1
          %s2183 = scalar_lea.sflag [#allocation6], %s2182
          %s2184 = sand.u32 %s168, 1
          %s2185 = smul.addr %s2184, 16
          %s2186 = scalar_lea.vmem [#allocation10], %s2185
          %2187 = dma.done %s2183, 256
        $region92: #{lstm_pallas.1} parent=87 // pred_fallthru
          _
      $region88: #{lstm_pallas.1} parent=5 // pred_fallthru
        _
    $region6: #{lstm_pallas.1} parent=1 // loop_footer
      %s27 = sadd.s32 1, %s23
    $region7: #{lstm_pallas.1} parent=1 // loop_footer_branch
      %22 = sbr.rel target = $region3
    $region8: #{lstm_pallas.1} parent=1 // loop_exit
      _
    %2188 = vsyncpa [#allocation5], 1
    %s2189 = scalar_lea.sflag [#allocation5], 1
    %2190 = vsyncpa %s2189, 1
    %2191 = vsyncpa [#allocation8], 1
    %2192 = vsyncpa [#allocation6], 1
    %s2193 = scalar_lea.sflag [#allocation6], 1
    %2194 = vsyncpa %s2193, 1
    %2195 = vsyncpa [#allocation12], 1

</llo_original>
